<compile_context>
chip_gen: v5e
topology: v5e:2x2
jax: 0.10.0
libtpu: 0.0.40
codegen_flags: <defaults>
</compile_context>

<pallas_src>
import functools
from math import sqrt

import jax
import jax.numpy as jnp
from jax.experimental import pallas as pl
from jax.experimental.pallas import tpu as pltpu


# ----------------------------- helpers ---------------------------------------

def _layer_norm(x, w, b, eps=1e-5):
    mu = jnp.mean(x, axis=-1, keepdims=True)
    var = jnp.mean((x - mu) ** 2, axis=-1, keepdims=True)
    return (x - mu) * jax.lax.rsqrt(var + eps) * w + b


def _mlp_chunk(ff):
    """Largest chunk of the 4D MLP hidden (multiple of 128, <=1024) dividing ff."""
    for c in (1024, 512, 256, 128):
        if ff > c and ff % c == 0:
            return c
    return ff


def _chip_defaults(batch):
    """(num_batch_tiles, vmem_limit_bytes) based on TPU generation."""
    kind = ""
    try:
        kind = jax.devices()[0].device_kind.lower()
    except Exception:
        pass
    if "v7" in kind:
        # 2 TensorCores, 64 MiB VMEM per core: split batch, leave headroom.
        nb = 2 if (batch >= 2 and batch % 2 == 0) else 1
        return nb, 56 * 1024 * 1024
    if "v6" in kind or "v5e" in kind or "v5 lite" in kind or "v5lite" in kind:
        # single TensorCore, 128 MiB physical: never re-stream weights.
        return 1, 100 * 1024 * 1024
    # unknown / other (v4, v5p, CPU-interpret): conservative.
    return 1, 64 * 1024 * 1024


# ----------------------------- fused kernel ----------------------------------

def fused_text_encoder_kernel(
        x_in_ref, eoth_ref,
        ln1w_ref, ln1b_ref, wqkv_ref, bqkv_ref, wo_ref, bo_ref,
        ln2w_ref, ln2b_ref, wfc_ref, bfc_ref, wpr_ref, bpr_ref,
        lnfw_ref, lnfb_ref, proj_ref,
        o_ref, resid_ref, *, num_heads):
    """Grid = (batch_tiles, L).  resid_ref (VMEM scratch) carries the residual
    stream across the layer axis; o_ref (B,1,Dout) is written only at l==L-1."""
    l = pl.program_id(1)
    TB, S, D = resid_ref.shape
    H = num_heads
    hd = D // H

    # ---- layer 0: load the (pos-emb-added, bf16) prompt tile into residual --
    @pl.when(l == 0)
    def _():
        resid_ref[...] = x_in_ref[...].astype(jnp.float32)

    x = resid_ref[...]                                        # (TB, S, D) f32

    # ---------------- attention: x = x + MHA(ln_1(x)) ------------------------
    h = _layer_norm(x, ln1w_ref[0, 0], ln1b_ref[0, 0])
    h2 = h.reshape(TB * S, D).astype(jnp.bfloat16)
    qkv = jnp.dot(h2, wqkv_ref[0],
                  preferred_element_type=jnp.float32) + bqkv_ref[0, 0]

    def heads(t):                                             # (TB*S,D)->(TB*H,S,hd)
        return t.reshape(TB, S, H, hd).transpose(0, 2, 1, 3).reshape(TB * H, S, hd)

    q = heads(qkv[:, 0 * D:1 * D]) * (1.0 / sqrt(hd))         # fold scale into q
    k = heads(qkv[:, 1 * D:2 * D])
    v = heads(qkv[:, 2 * D:3 * D])

    scores = jnp.einsum('nqd,nkd->nqk',
                        q.astype(jnp.bfloat16), k.astype(jnp.bfloat16),
                        preferred_element_type=jnp.float32)   # (TB*H, S, S)

    # in-kernel causal mask (no (S,S) mask DMA)
    row = jax.lax.broadcasted_iota(jnp.int32, (S, S), 0)
    col = jax.lax.broadcasted_iota(jnp.int32, (S, S), 1)
    scores = jnp.where((col <= row)[None, :, :], scores, -1e30)

    scores = scores - jnp.max(scores, axis=-1, keepdims=True)
    p = jnp.exp(scores)
    p = p * pl.reciprocal(jnp.sum(p, axis=-1, keepdims=True), approx=True)

    attn = jnp.einsum('nqk,nkd->nqd', p.astype(jnp.bfloat16),
                      v.astype(jnp.bfloat16),
                      preferred_element_type=jnp.float32)     # (TB*H, S, hd)
    attn = attn.reshape(TB, H, S, hd).transpose(0, 2, 1, 3).reshape(TB * S, D)
    attn = jnp.dot(attn.astype(jnp.bfloat16), wo_ref[0],
                   preferred_element_type=jnp.float32) + bo_ref[0, 0]
    x = x + attn.reshape(TB, S, D)

    # -------- MLP: x = x + MLP(ln_2(x)), QuickGELU, chunked hidden -----------
    h = _layer_norm(x, ln2w_ref[0, 0], ln2b_ref[0, 0])
    h2 = h.reshape(TB * S, D).astype(jnp.bfloat16)
    FF = wfc_ref.shape[-1]                                    # static (4*D)
    chunk = _mlp_chunk(FF)
    acc = jnp.zeros((TB * S, D), jnp.float32)
    for c in range(FF // chunk):                              # static unroll
        c0, c1 = c * chunk, (c + 1) * chunk
        hc = jnp.dot(h2, wfc_ref[0, :, c0:c1],
                     preferred_element_type=jnp.float32) + bfc_ref[0, 0, c0:c1]
        hc = hc * jax.nn.sigmoid(1.702 * hc)                  # QuickGELU, f32
        acc = acc + jnp.dot(hc.astype(jnp.bfloat16), wpr_ref[0, c0:c1, :],
                            preferred_element_type=jnp.float32)
    x = x + (acc + bpr_ref[0, 0]).reshape(TB, S, D)

    resid_ref[...] = x

    # -------- last layer: ln_final + EOT gather + text_projection ------------
    @pl.when(l == pl.num_programs(1) - 1)
    def _():
        dout = proj_ref.shape[1]
        oh = eoth_ref[...].reshape(TB, S)                     # one-hot over S
        eot_x = jnp.sum(x * oh[:, :, None], axis=1)           # (TB, D)
        hfin = _layer_norm(eot_x, lnfw_ref[0], lnfb_ref[0])
        res = jnp.dot(hfin.astype(jnp.bfloat16), proj_ref[...],
                      preferred_element_type=jnp.float32)     # (TB, Dout)
        o_ref[...] = res.reshape(TB, 1, dout)


# ----------------------------- forward wrapper --------------------------------

def text_encoder_forward(prompts, tokenized_prompts, params, *,
                         batch_tile=None, vmem_limit_bytes=None):
    """prompts: (B, S, D) float; tokenized_prompts: (B, S) int. Returns (B, Dout)."""
    B, S, D = prompts.shape
    L = params['wqkv'].shape[0]
    H = params['num_heads']
    Dout = params['proj'].shape[1]

    nb_default, vmem_default = _chip_defaults(B)
    TB = batch_tile if batch_tile is not None else B // nb_default
    assert B % TB == 0
    nb = B // TB
    vmem = vmem_limit_bytes if vmem_limit_bytes is not None else vmem_default

    # pos-emb add as one XLA elementwise op; bf16 activations into the kernel.
    x_in = (prompts + params['pos_emb'][None, :, :]).astype(jnp.bfloat16)
    # EOT = argmax over token ids (CLIP: EOT has the largest id); one-hot for
    # the in-kernel gather of the EOT row from the VMEM-resident residual.
    eot = jnp.argmax(tokenized_prompts, axis=-1)
    eot_onehot = jax.nn.one_hot(eot, S, dtype=jnp.float32).reshape(B, 1, S)

    weight_names = ['ln1_w', 'ln1_b', 'wqkv', 'bqkv', 'wo', 'bo',
                    'ln2_w', 'ln2_b', 'wfc', 'bfc', 'wpr', 'bpr']
    weights = [params[n] for n in weight_names]

    def w_spec(arr):
        nd = arr.ndim
        return pl.BlockSpec((1,) + arr.shape[1:],
                            lambda b, l, nd=nd: (l,) + (0,) * (nd - 1))

    in_specs = [pl.BlockSpec((TB, S, D), lambda b, l: (b, 0, 0)),    # x_in
                pl.BlockSpec((TB, 1, S), lambda b, l: (b, 0, 0))]    # eot one-hot
    in_specs += [w_spec(w) for w in weights]
    in_specs += [pl.BlockSpec((1, D), lambda b, l: (0, 0)),          # lnf_w
                 pl.BlockSpec((1, D), lambda b, l: (0, 0)),          # lnf_b
                 pl.BlockSpec(params['proj'].shape, lambda b, l: (0, 0))]

    # advisory cost estimate for the XLA scheduler
    wbytes = sum(int(w.size) * w.dtype.itemsize for w in weights)
    wbytes += int(params['lnf_w'].size + params['lnf_b'].size) * 4
    wbytes += int(params['proj'].size) * params['proj'].dtype.itemsize
    flops = 2 * B * S * L * 12 * D * D + 4 * B * L * S * S * D + 2 * B * D * Dout
    transcend = B * L * (H * S * S + 4 * D * S)
    bytes_acc = nb * wbytes + int(x_in.size) * 2 + int(eot_onehot.size) * 4 \
        + B * Dout * 4
    ce = pl.CostEstimate(flops=flops, transcendentals=transcend,
                         bytes_accessed=bytes_acc)

    out = pl.pallas_call(
        functools.partial(fused_text_encoder_kernel, num_heads=H),
        out_shape=jax.ShapeDtypeStruct((B, 1, Dout), jnp.float32),
        grid=(nb, L),
        in_specs=in_specs,
        out_specs=pl.BlockSpec((TB, 1, Dout), lambda b, l: (b, 0, 0)),
        scratch_shapes=[pltpu.VMEM((TB, S, D), jnp.float32)],   # residual stream
        compiler_params=pltpu.CompilerParams(
            dimension_semantics=("parallel", "arbitrary"),
            vmem_limit_bytes=vmem),
        cost_estimate=ce,
    )(x_in, eot_onehot, *weights,
      params['lnf_w'], params['lnf_b'], params['proj'])
    return out.reshape(B, Dout)


# ----------------------------- parameter init --------------------------------

def init_params(key, *, seq, width, heads, layers, embed_dim):
    D, S, L = width, seq, layers
    ks = jax.random.split(key, 10)

    def nrm(k, shape, dtype=jnp.float32, scale=0.02):
        return (scale * jax.random.normal(k, shape, dtype=jnp.float32)).astype(dtype)

    return dict(
        num_heads=heads,
        pos_emb=nrm(ks[0], (S, D)),                               # f32
        # per-layer weights stacked along L; matmul weights in bf16
        ln1_w=jnp.ones((L, 1, D), jnp.float32),
        ln1_b=jnp.zeros((L, 1, D), jnp.float32),
        wqkv=nrm(ks[1], (L, D, 3 * D), jnp.bfloat16),
        bqkv=nrm(ks[2], (L, 1, 3 * D)),
        wo=nrm(ks[3], (L, D, D), jnp.bfloat16),
        bo=nrm(ks[4], (L, 1, D)),
        ln2_w=jnp.ones((L, 1, D), jnp.float32),
        ln2_b=jnp.zeros((L, 1, D), jnp.float32),
        wfc=nrm(ks[5], (L, D, 4 * D), jnp.bfloat16),
        bfc=nrm(ks[6], (L, 1, 4 * D)),
        wpr=nrm(ks[7], (L, 4 * D, D), jnp.bfloat16),
        bpr=nrm(ks[8], (L, 1, D)),
        lnf_w=jnp.ones((1, D), jnp.float32),
        lnf_b=jnp.zeros((1, D), jnp.float32),
        proj=nrm(ks[9], (D, embed_dim), jnp.bfloat16),
    )


# ----------------------------- main -------------------------------------------

if __name__ == "__main__":
    # NOTE: demo shapes are intentionally tiny; for real CLIP widths use
    # D/Dout multiples of 128 and pad S to a multiple of 8.
    B, S, D, H, L, EMBED = 2, 8, 32, 4, 2, 64

    key = jax.random.PRNGKey(0)
    k_prm, k_tok, k_par = jax.random.split(key, 3)

    prompts = jax.random.normal(k_prm, (B, S, D), dtype=jnp.float32)
    tokenized_prompts = jax.random.randint(k_tok, (B, S), 1, 100, dtype=jnp.int32)
    # plant EOT (max token id) at fixed positions so argmax is well defined
    tokenized_prompts = tokenized_prompts.at[0, 5].set(49407)
    tokenized_prompts = tokenized_prompts.at[1, 7].set(49407)

    params = init_params(k_par, seq=S, width=D, heads=H, layers=L,
                         embed_dim=EMBED)

    out = text_encoder_forward(prompts, tokenized_prompts, params)
    out = jax.block_until_ready(out)
    assert out.shape == (B, EMBED) and out.dtype == jnp.float32
    print("KERNEL_OK")
</pallas_src>

<mosaic_0001>
module attributes {stable_mosaic.version = 11 : i64} {
  func.func @fused_text_encoder_kernel(%arg0: i32, %arg1: i32, %arg2: memref<2x8x32xbf16, #tpu.memory_space<vmem>>, %arg3: memref<2x1x8xf32, #tpu.memory_space<vmem>>, %arg4: memref<1x1x32xf32, #tpu.memory_space<vmem>>, %arg5: memref<1x1x32xf32, #tpu.memory_space<vmem>>, %arg6: memref<1x32x96xbf16, #tpu.memory_space<vmem>>, %arg7: memref<1x1x96xf32, #tpu.memory_space<vmem>>, %arg8: memref<1x32x32xbf16, #tpu.memory_space<vmem>>, %arg9: memref<1x1x32xf32, #tpu.memory_space<vmem>>, %arg10: memref<1x1x32xf32, #tpu.memory_space<vmem>>, %arg11: memref<1x1x32xf32, #tpu.memory_space<vmem>>, %arg12: memref<1x32x128xbf16, #tpu.memory_space<vmem>>, %arg13: memref<1x1x128xf32, #tpu.memory_space<vmem>>, %arg14: memref<1x128x32xbf16, #tpu.memory_space<vmem>>, %arg15: memref<1x1x32xf32, #tpu.memory_space<vmem>>, %arg16: memref<1x32xf32, #tpu.memory_space<vmem>>, %arg17: memref<1x32xf32, #tpu.memory_space<vmem>>, %arg18: memref<32x64xbf16, #tpu.memory_space<vmem>>, %arg19: memref<2x1x64xf32, #tpu.memory_space<vmem>>, %arg20: memref<2x8x32xf32, #tpu.memory_space<vmem>>) attributes {dimension_semantics = [#tpu.dimension_semantics<parallel>, #tpu.dimension_semantics<arbitrary>], iteration_bounds = array<i64: 1, 2>, scalar_prefetch = 0 : i64, scratch_operands = 1 : i64, tpu.core_type = #tpu.core_type<tc>, window_params = [{transform_indices = @transform_0, window_bounds = array<i64: 2, 8, 32>}, {transform_indices = @transform_1, window_bounds = array<i64: 2, 1, 8>}, {transform_indices = @transform_2, window_bounds = array<i64: 1, 1, 32>}, {transform_indices = @transform_3, window_bounds = array<i64: 1, 1, 32>}, {transform_indices = @transform_4, window_bounds = array<i64: 1, 32, 96>}, {transform_indices = @transform_5, window_bounds = array<i64: 1, 1, 96>}, {transform_indices = @transform_6, window_bounds = array<i64: 1, 32, 32>}, {transform_indices = @transform_7, window_bounds = array<i64: 1, 1, 32>}, {transform_indices = @transform_8, window_bounds = array<i64: 1, 1, 32>}, {transform_indices = @transform_9, window_bounds = array<i64: 1, 1, 32>}, {transform_indices = @transform_10, window_bounds = array<i64: 1, 32, 128>}, {transform_indices = @transform_11, window_bounds = array<i64: 1, 1, 128>}, {transform_indices = @transform_12, window_bounds = array<i64: 1, 128, 32>}, {transform_indices = @transform_13, window_bounds = array<i64: 1, 1, 32>}, {pipeline_mode = #tpu.pipeline_mode<synchronous>, transform_indices = @transform_14, window_bounds = array<i64: 1, 32>}, {pipeline_mode = #tpu.pipeline_mode<synchronous>, transform_indices = @transform_15, window_bounds = array<i64: 1, 32>}, {pipeline_mode = #tpu.pipeline_mode<synchronous>, transform_indices = @transform_16, window_bounds = array<i64: 32, 64>}, {transform_indices = @transform_17, window_bounds = array<i64: 2, 1, 64>}]} {
    %c0_i32 = arith.constant 0 : i32
    %0 = arith.cmpi eq, %arg1, %c0_i32 : i32
    %1 = arith.extui %0 : i1 to i32
    %c0_i32_0 = arith.constant 0 : i32
    %2 = arith.cmpi ne, %1, %c0_i32_0 : i32
    scf.if %2 {
      %c0_65 = arith.constant 0 : index
      %c0_66 = arith.constant 0 : index
      %c0_67 = arith.constant 0 : index
      %157 = vector.load %arg2[%c0_65, %c0_66, %c0_67] : memref<2x8x32xbf16, #tpu.memory_space<vmem>>, vector<2x8x32xbf16>
      %158 = arith.extf %157 : vector<2x8x32xbf16> to vector<2x8x32xf32>
      %c0_68 = arith.constant 0 : index
      %c0_69 = arith.constant 0 : index
      %c0_70 = arith.constant 0 : index
      %159 = vector.load %arg20[%c0_68, %c0_69, %c0_70] : memref<2x8x32xf32, #tpu.memory_space<vmem>>, vector<2x8x32xf32>
      tpu.vector_store %arg20[%c0_68, %c0_69, %c0_70], %158 {strides = array<i32>} : memref<2x8x32xf32, #tpu.memory_space<vmem>>, vector<2x8x32xf32>,
    } else {
    }
    %c0 = arith.constant 0 : index
    %c0_1 = arith.constant 0 : index
    %c0_2 = arith.constant 0 : index
    %3 = vector.load %arg20[%c0, %c0_1, %c0_2] : memref<2x8x32xf32, #tpu.memory_space<vmem>>, vector<2x8x32xf32>
    %c0_3 = arith.constant 0 : index
    %c0_4 = arith.constant 0 : index
    %c0_5 = arith.constant 0 : index
    %4 = vector.load %arg4[%c0_3, %c0_4, %c0_5] : memref<1x1x32xf32, #tpu.memory_space<vmem>>, vector<1x1x32xf32>
    %5 = vector.shape_cast %4 : vector<1x1x32xf32> to vector<32xf32>
    %c0_6 = arith.constant 0 : index
    %c0_7 = arith.constant 0 : index
    %c0_8 = arith.constant 0 : index
    %6 = vector.load %arg5[%c0_6, %c0_7, %c0_8] : memref<1x1x32xf32, #tpu.memory_space<vmem>>, vector<1x1x32xf32>
    %7 = vector.shape_cast %6 : vector<1x1x32xf32> to vector<32xf32>
    %cst = arith.constant dense<0.000000e+00> : vector<2x8xf32>
    %8 = vector.multi_reduction <add>, %3, %cst [2] : vector<2x8x32xf32> to vector<2x8xf32>
    %9 = vector.shape_cast %8 : vector<2x8xf32> to vector<2x8x1xf32>
    %cst_9 = arith.constant 3.200000e+01 : f32
    %10 = vector.broadcast %cst_9 : f32 to vector<2x8x1xf32>
    %11 = arith.divf %9, %10 : vector<2x8x1xf32>
    %12 = vector.broadcast %11 : vector<2x8x1xf32> to vector<2x8x32xf32>
    %13 = arith.subf %3, %12 : vector<2x8x32xf32>
    %14 = arith.mulf %13, %13 : vector<2x8x32xf32>
    %cst_10 = arith.constant dense<0.000000e+00> : vector<2x8xf32>
    %15 = vector.multi_reduction <add>, %14, %cst_10 [2] : vector<2x8x32xf32> to vector<2x8xf32>
    %16 = vector.shape_cast %15 : vector<2x8xf32> to vector<2x8x1xf32>
    %cst_11 = arith.constant 3.200000e+01 : f32
    %17 = vector.broadcast %cst_11 : f32 to vector<2x8x1xf32>
    %18 = arith.divf %16, %17 : vector<2x8x1xf32>
    %19 = vector.broadcast %11 : vector<2x8x1xf32> to vector<2x8x32xf32>
    %20 = arith.subf %3, %19 : vector<2x8x32xf32>
    %cst_12 = arith.constant 9.99999974E-6 : f32
    %21 = vector.broadcast %cst_12 : f32 to vector<2x8x1xf32>
    %22 = arith.addf %18, %21 : vector<2x8x1xf32>
    %23 = math.rsqrt %22 : vector<2x8x1xf32>
    %24 = vector.broadcast %23 : vector<2x8x1xf32> to vector<2x8x32xf32>
    %25 = arith.mulf %20, %24 : vector<2x8x32xf32>
    %26 = vector.shape_cast %5 : vector<32xf32> to vector<1x1x32xf32>
    %27 = vector.broadcast %26 : vector<1x1x32xf32> to vector<2x8x32xf32>
    %28 = arith.mulf %25, %27 : vector<2x8x32xf32>
    %29 = vector.shape_cast %7 : vector<32xf32> to vector<1x1x32xf32>
    %30 = vector.broadcast %29 : vector<1x1x32xf32> to vector<2x8x32xf32>
    %31 = arith.addf %28, %30 : vector<2x8x32xf32>
    %32 = vector.shape_cast %31 : vector<2x8x32xf32> to vector<16x32xf32>
    %33 = arith.truncf %32 : vector<16x32xf32> to vector<16x32xbf16>
    %c0_13 = arith.constant 0 : index
    %c0_14 = arith.constant 0 : index
    %c0_15 = arith.constant 0 : index
    %34 = vector.load %arg6[%c0_13, %c0_14, %c0_15] : memref<1x32x96xbf16, #tpu.memory_space<vmem>>, vector<1x32x96xbf16>
    %35 = vector.shape_cast %34 : vector<1x32x96xbf16> to vector<32x96xbf16>
    %cst_16 = arith.constant dense<0.000000e+00> : vector<16x96xf32>
    %36 = tpu.matmul %33, %35, %cst_16 {dimension_numbers = #tpu.dot_dimension_numbers<[1], [0], [0], [1], [0, 0, 1, 1], [], []>} : vector<16x32xbf16>, vector<32x96xbf16>, vector<16x96xf32> -> vector<16x96xf32>
    %c0_17 = arith.constant 0 : index
    %c0_18 = arith.constant 0 : index
    %c0_19 = arith.constant 0 : index
    %37 = vector.load %arg7[%c0_17, %c0_18, %c0_19] : memref<1x1x96xf32, #tpu.memory_space<vmem>>, vector<1x1x96xf32>
    %38 = vector.shape_cast %37 : vector<1x1x96xf32> to vector<96xf32>
    %39 = vector.shape_cast %38 : vector<96xf32> to vector<1x96xf32>
    %40 = vector.broadcast %39 : vector<1x96xf32> to vector<16x96xf32>
    %41 = arith.addf %36, %40 : vector<16x96xf32>
    %42 = vector.extract_strided_slice %41 {offsets = [0, 0], sizes = [16, 32], strides = [1, 1]} : vector<16x96xf32> to vector<16x32xf32>
    %43 = vector.shape_cast %42 : vector<16x32xf32> to vector<2x8x4x8xf32>
    %44 = tpu.transpose %43, [0, 2, 1, 3] : vector<2x8x4x8xf32> -> vector<2x4x8x8xf32>
    %45 = vector.shape_cast %44 : vector<2x4x8x8xf32> to vector<8x8x8xf32>
    %cst_20 = arith.constant 0.353553385 : f32
    %46 = vector.broadcast %cst_20 : f32 to vector<8x8x8xf32>
    %47 = arith.mulf %45, %46 : vector<8x8x8xf32>
    %48 = vector.extract_strided_slice %41 {offsets = [0, 32], sizes = [16, 32], strides = [1, 1]} : vector<16x96xf32> to vector<16x32xf32>
    %49 = vector.shape_cast %48 : vector<16x32xf32> to vector<2x8x4x8xf32>
    %50 = tpu.transpose %49, [0, 2, 1, 3] : vector<2x8x4x8xf32> -> vector<2x4x8x8xf32>
    %51 = vector.shape_cast %50 : vector<2x4x8x8xf32> to vector<8x8x8xf32>
    %52 = vector.extract_strided_slice %41 {offsets = [0, 64], sizes = [16, 32], strides = [1, 1]} : vector<16x96xf32> to vector<16x32xf32>
    %53 = vector.shape_cast %52 : vector<16x32xf32> to vector<2x8x4x8xf32>
    %54 = tpu.transpose %53, [0, 2, 1, 3] : vector<2x8x4x8xf32> -> vector<2x4x8x8xf32>
    %55 = vector.shape_cast %54 : vector<2x4x8x8xf32> to vector<8x8x8xf32>
    %56 = arith.truncf %47 : vector<8x8x8xf32> to vector<8x8x8xbf16>
    %57 = arith.truncf %51 : vector<8x8x8xf32> to vector<8x8x8xbf16>
    "tpu.trace_start"() <{level = 10 : i32, message = "nqd,nkd->nqk"}> : () -> ()
    %cst_21 = arith.constant dense<0.000000e+00> : vector<8x8x8xf32>
    %58 = tpu.matmul %56, %57, %cst_21 {dimension_numbers = #tpu.dot_dimension_numbers<[2], [2], [1], [1], [0, 0, 0, 1, 1, 1], [0], [0]>} : vector<8x8x8xbf16>, vector<8x8x8xbf16>, vector<8x8x8xf32> -> vector<8x8x8xf32>
    "tpu.trace_stop"() : () -> ()
    %59 = tpu.iota {dimensions = array<i32: 0>} : vector<8x8xi32>
    %60 = tpu.iota {dimensions = array<i32: 1>} : vector<8x8xi32>
    %61 = arith.cmpi sle, %60, %59 : vector<8x8xi32>
    %62 = vector.shape_cast %61 : vector<8x8xi1> to vector<1x8x8xi1>
    %cst_22 = arith.constant -1.000000e+30 : f32
    %63 = vector.shape_cast %62 : vector<1x8x8xi1> to vector<1x8x8xi1>
    %64 = vector.broadcast %63 : vector<1x8x8xi1> to vector<8x8x8xi1>
    %65 = vector.broadcast %cst_22 : f32 to vector<8x8x8xf32>
    %66 = arith.select %64, %58, %65 : vector<8x8x8xi1>, vector<8x8x8xf32>
    %cst_23 = arith.constant dense<0xFF800000> : vector<8x8xf32>
    %67 = vector.multi_reduction <maximumf>, %66, %cst_23 [2] : vector<8x8x8xf32> to vector<8x8xf32>
    %68 = vector.shape_cast %67 : vector<8x8xf32> to vector<8x8x1xf32>
    %69 = vector.broadcast %68 : vector<8x8x1xf32> to vector<8x8x8xf32>
    %70 = arith.subf %66, %69 : vector<8x8x8xf32>
    %71 = math.exp %70 : vector<8x8x8xf32>
    %cst_24 = arith.constant dense<0.000000e+00> : vector<8x8xf32>
    %72 = vector.multi_reduction <add>, %71, %cst_24 [2] : vector<8x8x8xf32> to vector<8x8xf32>
    %73 = vector.shape_cast %72 : vector<8x8xf32> to vector<8x8x1xf32>
    %74 = tpu.reciprocal %73 {approx = true} : vector<8x8x1xf32> -> vector<8x8x1xf32>
    %75 = vector.broadcast %74 : vector<8x8x1xf32> to vector<8x8x8xf32>
    %76 = arith.mulf %71, %75 : vector<8x8x8xf32>
    %77 = arith.truncf %76 : vector<8x8x8xf32> to vector<8x8x8xbf16>
    %78 = arith.truncf %55 : vector<8x8x8xf32> to vector<8x8x8xbf16>
    "tpu.trace_start"() <{level = 10 : i32, message = "nqk,nkd->nqd"}> : () -> ()
    %cst_25 = arith.constant dense<0.000000e+00> : vector<8x8x8xf32>
    %79 = tpu.matmul %77, %78, %cst_25 {dimension_numbers = #tpu.dot_dimension_numbers<[2], [1], [1], [2], [0, 0, 0, 1, 1, 2], [0], [0]>} : vector<8x8x8xbf16>, vector<8x8x8xbf16>, vector<8x8x8xf32> -> vector<8x8x8xf32>
    "tpu.trace_stop"() : () -> ()
    %80 = vector.shape_cast %79 : vector<8x8x8xf32> to vector<2x4x8x8xf32>
    %81 = tpu.transpose %80, [0, 2, 1, 3] : vector<2x4x8x8xf32> -> vector<2x8x4x8xf32>
    %82 = vector.shape_cast %81 : vector<2x8x4x8xf32> to vector<16x32xf32>
    %83 = arith.truncf %82 : vector<16x32xf32> to vector<16x32xbf16>
    %c0_26 = arith.constant 0 : index
    %c0_27 = arith.constant 0 : index
    %c0_28 = arith.constant 0 : index
    %84 = vector.load %arg8[%c0_26, %c0_27, %c0_28] : memref<1x32x32xbf16, #tpu.memory_space<vmem>>, vector<1x32x32xbf16>
    %85 = vector.shape_cast %84 : vector<1x32x32xbf16> to vector<32x32xbf16>
    %cst_29 = arith.constant dense<0.000000e+00> : vector<16x32xf32>
    %86 = tpu.matmul %83, %85, %cst_29 {dimension_numbers = #tpu.dot_dimension_numbers<[1], [0], [0], [1], [0, 0, 1, 1], [], []>} : vector<16x32xbf16>, vector<32x32xbf16>, vector<16x32xf32> -> vector<16x32xf32>
    %c0_30 = arith.constant 0 : index
    %c0_31 = arith.constant 0 : index
    %c0_32 = arith.constant 0 : index
    %87 = vector.load %arg9[%c0_30, %c0_31, %c0_32] : memref<1x1x32xf32, #tpu.memory_space<vmem>>, vector<1x1x32xf32>
    %88 = vector.shape_cast %87 : vector<1x1x32xf32> to vector<32xf32>
    %89 = vector.shape_cast %88 : vector<32xf32> to vector<1x32xf32>
    %90 = vector.broadcast %89 : vector<1x32xf32> to vector<16x32xf32>
    %91 = arith.addf %86, %90 : vector<16x32xf32>
    %92 = vector.shape_cast %91 : vector<16x32xf32> to vector<2x8x32xf32>
    %93 = arith.addf %3, %92 : vector<2x8x32xf32>
    %c0_33 = arith.constant 0 : index
    %c0_34 = arith.constant 0 : index
    %c0_35 = arith.constant 0 : index
    %94 = vector.load %arg10[%c0_33, %c0_34, %c0_35] : memref<1x1x32xf32, #tpu.memory_space<vmem>>, vector<1x1x32xf32>
    %95 = vector.shape_cast %94 : vector<1x1x32xf32> to vector<32xf32>
    %c0_36 = arith.constant 0 : index
    %c0_37 = arith.constant 0 : index
    %c0_38 = arith.constant 0 : index
    %96 = vector.load %arg11[%c0_36, %c0_37, %c0_38] : memref<1x1x32xf32, #tpu.memory_space<vmem>>, vector<1x1x32xf32>
    %97 = vector.shape_cast %96 : vector<1x1x32xf32> to vector<32xf32>
    %cst_39 = arith.constant dense<0.000000e+00> : vector<2x8xf32>
    %98 = vector.multi_reduction <add>, %93, %cst_39 [2] : vector<2x8x32xf32> to vector<2x8xf32>
    %99 = vector.shape_cast %98 : vector<2x8xf32> to vector<2x8x1xf32>
    %cst_40 = arith.constant 3.200000e+01 : f32
    %100 = vector.broadcast %cst_40 : f32 to vector<2x8x1xf32>
    %101 = arith.divf %99, %100 : vector<2x8x1xf32>
    %102 = vector.broadcast %101 : vector<2x8x1xf32> to vector<2x8x32xf32>
    %103 = arith.subf %93, %102 : vector<2x8x32xf32>
    %104 = arith.mulf %103, %103 : vector<2x8x32xf32>
    %cst_41 = arith.constant dense<0.000000e+00> : vector<2x8xf32>
    %105 = vector.multi_reduction <add>, %104, %cst_41 [2] : vector<2x8x32xf32> to vector<2x8xf32>
    %106 = vector.shape_cast %105 : vector<2x8xf32> to vector<2x8x1xf32>
    %cst_42 = arith.constant 3.200000e+01 : f32
    %107 = vector.broadcast %cst_42 : f32 to vector<2x8x1xf32>
    %108 = arith.divf %106, %107 : vector<2x8x1xf32>
    %109 = vector.broadcast %101 : vector<2x8x1xf32> to vector<2x8x32xf32>
    %110 = arith.subf %93, %109 : vector<2x8x32xf32>
    %cst_43 = arith.constant 9.99999974E-6 : f32
    %111 = vector.broadcast %cst_43 : f32 to vector<2x8x1xf32>
    %112 = arith.addf %108, %111 : vector<2x8x1xf32>
    %113 = math.rsqrt %112 : vector<2x8x1xf32>
    %114 = vector.broadcast %113 : vector<2x8x1xf32> to vector<2x8x32xf32>
    %115 = arith.mulf %110, %114 : vector<2x8x32xf32>
    %116 = vector.shape_cast %95 : vector<32xf32> to vector<1x1x32xf32>
    %117 = vector.broadcast %116 : vector<1x1x32xf32> to vector<2x8x32xf32>
    %118 = arith.mulf %115, %117 : vector<2x8x32xf32>
    %119 = vector.shape_cast %97 : vector<32xf32> to vector<1x1x32xf32>
    %120 = vector.broadcast %119 : vector<1x1x32xf32> to vector<2x8x32xf32>
    %121 = arith.addf %118, %120 : vector<2x8x32xf32>
    %122 = vector.shape_cast %121 : vector<2x8x32xf32> to vector<16x32xf32>
    %123 = arith.truncf %122 : vector<16x32xf32> to vector<16x32xbf16>
    %cst_44 = arith.constant 0.000000e+00 : f32
    %124 = vector.broadcast %cst_44 : f32 to vector<16x32xf32>
    %c0_45 = arith.constant 0 : index
    %c0_46 = arith.constant 0 : index
    %c0_47 = arith.constant 0 : index
    %125 = vector.load %arg12[%c0_45, %c0_46, %c0_47] : memref<1x32x128xbf16, #tpu.memory_space<vmem>>, vector<1x32x128xbf16>
    %126 = vector.shape_cast %125 : vector<1x32x128xbf16> to vector<32x128xbf16>
    %cst_48 = arith.constant dense<0.000000e+00> : vector<16x128xf32>
    %127 = tpu.matmul %123, %126, %cst_48 {dimension_numbers = #tpu.dot_dimension_numbers<[1], [0], [0], [1], [0, 0, 1, 1], [], []>} : vector<16x32xbf16>, vector<32x128xbf16>, vector<16x128xf32> -> vector<16x128xf32>
    %c0_49 = arith.constant 0 : index
    %c0_50 = arith.constant 0 : index
    %c0_51 = arith.constant 0 : index
    %128 = vector.load %arg13[%c0_49, %c0_50, %c0_51] : memref<1x1x128xf32, #tpu.memory_space<vmem>>, vector<1x1x128xf32>
    %129 = vector.shape_cast %128 : vector<1x1x128xf32> to vector<128xf32>
    %130 = vector.shape_cast %129 : vector<128xf32> to vector<1x128xf32>
    %131 = vector.broadcast %130 : vector<1x128xf32> to vector<16x128xf32>
    %132 = arith.addf %127, %131 : vector<16x128xf32>
    %cst_52 = arith.constant 1.702000e+00 : f32
    %133 = vector.broadcast %cst_52 : f32 to vector<16x128xf32>
    %134 = arith.mulf %133, %132 : vector<16x128xf32>
    %135 = arith.negf %134 : vector<16x128xf32>
    %136 = math.exp %135 : vector<16x128xf32>
    %cst_53 = arith.constant 1.000000e+00 : f32
    %137 = vector.broadcast %cst_53 : f32 to vector<16x128xf32>
    %138 = arith.addf %137, %136 : vector<16x128xf32>
    %139 = arith.divf %137, %138 : vector<16x128xf32>
    %140 = arith.mulf %132, %139 : vector<16x128xf32>
    %141 = arith.truncf %140 : vector<16x128xf32> to vector<16x128xbf16>
    %c0_54 = arith.constant 0 : index
    %c0_55 = arith.constant 0 : index
    %c0_56 = arith.constant 0 : index
    %142 = vector.load %arg14[%c0_54, %c0_55, %c0_56] : memref<1x128x32xbf16, #tpu.memory_space<vmem>>, vector<1x128x32xbf16>
    %143 = vector.shape_cast %142 : vector<1x128x32xbf16> to vector<128x32xbf16>
    %cst_57 = arith.constant dense<0.000000e+00> : vector<16x32xf32>
    %144 = tpu.matmul %141, %143, %cst_57 {dimension_numbers = #tpu.dot_dimension_numbers<[1], [0], [0], [1], [0, 0, 1, 1], [], []>} : vector<16x128xbf16>, vector<128x32xbf16>, vector<16x32xf32> -> vector<16x32xf32>
    %145 = arith.addf %124, %144 : vector<16x32xf32>
    %c0_58 = arith.constant 0 : index
    %c0_59 = arith.constant 0 : index
    %c0_60 = arith.constant 0 : index
    %146 = vector.load %arg15[%c0_58, %c0_59, %c0_60] : memref<1x1x32xf32, #tpu.memory_space<vmem>>, vector<1x1x32xf32>
    %147 = vector.shape_cast %146 : vector<1x1x32xf32> to vector<32xf32>
    %148 = vector.shape_cast %147 : vector<32xf32> to vector<1x32xf32>
    %149 = vector.broadcast %148 : vector<1x32xf32> to vector<16x32xf32>
    %150 = arith.addf %145, %149 : vector<16x32xf32>
    %151 = vector.shape_cast %150 : vector<16x32xf32> to vector<2x8x32xf32>
    %152 = arith.addf %93, %151 : vector<2x8x32xf32>
    %c0_61 = arith.constant 0 : index
    %c0_62 = arith.constant 0 : index
    %c0_63 = arith.constant 0 : index
    %153 = vector.load %arg20[%c0_61, %c0_62, %c0_63] : memref<2x8x32xf32, #tpu.memory_space<vmem>>, vector<2x8x32xf32>
    tpu.vector_store %arg20[%c0_61, %c0_62, %c0_63], %152 {strides = array<i32>} : memref<2x8x32xf32, #tpu.memory_space<vmem>>, vector<2x8x32xf32>,
    %c1_i32 = arith.constant 1 : i32
    %154 = arith.cmpi eq, %arg1, %c1_i32 : i32
    %155 = arith.extui %154 : i1 to i32
    %c0_i32_64 = arith.constant 0 : i32
    %156 = arith.cmpi ne, %155, %c0_i32_64 : i32
    scf.if %156 {
      %c0_65 = arith.constant 0 : index
      %c0_66 = arith.constant 0 : index
      %c0_67 = arith.constant 0 : index
      %157 = vector.load %arg3[%c0_65, %c0_66, %c0_67] : memref<2x1x8xf32, #tpu.memory_space<vmem>>, vector<2x1x8xf32>
      %158 = vector.shape_cast %157 : vector<2x1x8xf32> to vector<2x8xf32>
      %159 = vector.shape_cast %158 : vector<2x8xf32> to vector<2x8x1xf32>
      %160 = vector.broadcast %159 : vector<2x8x1xf32> to vector<2x8x32xf32>
      %161 = arith.mulf %152, %160 : vector<2x8x32xf32>
      %cst_68 = arith.constant dense<0.000000e+00> : vector<2x32xf32>
      %162 = vector.multi_reduction <add>, %161, %cst_68 [1] : vector<2x8x32xf32> to vector<2x32xf32>
      %c0_69 = arith.constant 0 : index
      %c0_70 = arith.constant 0 : index
      %163 = vector.load %arg16[%c0_69, %c0_70] : memref<1x32xf32, #tpu.memory_space<vmem>>, vector<1x32xf32>
      %164 = vector.shape_cast %163 : vector<1x32xf32> to vector<32xf32>
      %c0_71 = arith.constant 0 : index
      %c0_72 = arith.constant 0 : index
      %165 = vector.load %arg17[%c0_71, %c0_72] : memref<1x32xf32, #tpu.memory_space<vmem>>, vector<1x32xf32>
      %166 = vector.shape_cast %165 : vector<1x32xf32> to vector<32xf32>
      %cst_73 = arith.constant dense<0.000000e+00> : vector<2xf32>
      %167 = vector.multi_reduction <add>, %162, %cst_73 [1] : vector<2x32xf32> to vector<2xf32>
      %168 = vector.shape_cast %167 : vector<2xf32> to vector<2x1xf32>
      %cst_74 = arith.constant 3.200000e+01 : f32
      %169 = vector.broadcast %cst_74 : f32 to vector<2x1xf32>
      %170 = arith.divf %168, %169 : vector<2x1xf32>
      %171 = vector.broadcast %170 : vector<2x1xf32> to vector<2x32xf32>
      %172 = arith.subf %162, %171 : vector<2x32xf32>
      %173 = arith.mulf %172, %172 : vector<2x32xf32>
      %cst_75 = arith.constant dense<0.000000e+00> : vector<2xf32>
      %174 = vector.multi_reduction <add>, %173, %cst_75 [1] : vector<2x32xf32> to vector<2xf32>
      %175 = vector.shape_cast %174 : vector<2xf32> to vector<2x1xf32>
      %cst_76 = arith.constant 3.200000e+01 : f32
      %176 = vector.broadcast %cst_76 : f32 to vector<2x1xf32>
      %177 = arith.divf %175, %176 : vector<2x1xf32>
      %178 = vector.broadcast %170 : vector<2x1xf32> to vector<2x32xf32>
      %179 = arith.subf %162, %178 : vector<2x32xf32>
      %cst_77 = arith.constant 9.99999974E-6 : f32
      %180 = vector.broadcast %cst_77 : f32 to vector<2x1xf32>
      %181 = arith.addf %177, %180 : vector<2x1xf32>
      %182 = math.rsqrt %181 : vector<2x1xf32>
      %183 = vector.broadcast %182 : vector<2x1xf32> to vector<2x32xf32>
      %184 = arith.mulf %179, %183 : vector<2x32xf32>
      %185 = vector.shape_cast %164 : vector<32xf32> to vector<1x32xf32>
      %186 = vector.broadcast %185 : vector<1x32xf32> to vector<2x32xf32>
      %187 = arith.mulf %184, %186 : vector<2x32xf32>
      %188 = vector.shape_cast %166 : vector<32xf32> to vector<1x32xf32>
      %189 = vector.broadcast %188 : vector<1x32xf32> to vector<2x32xf32>
      %190 = arith.addf %187, %189 : vector<2x32xf32>
      %191 = arith.truncf %190 : vector<2x32xf32> to vector<2x32xbf16>
      %c0_78 = arith.constant 0 : index
      %c0_79 = arith.constant 0 : index
      %192 = vector.load %arg18[%c0_78, %c0_79] : memref<32x64xbf16, #tpu.memory_space<vmem>>, vector<32x64xbf16>
      %cst_80 = arith.constant dense<0.000000e+00> : vector<2x64xf32>
      %193 = tpu.matmul %191, %192, %cst_80 {dimension_numbers = #tpu.dot_dimension_numbers<[1], [0], [0], [1], [0, 0, 1, 1], [], []>} : vector<2x32xbf16>, vector<32x64xbf16>, vector<2x64xf32> -> vector<2x64xf32>
      %194 = vector.shape_cast %193 : vector<2x64xf32> to vector<2x1x64xf32>
      %c0_81 = arith.constant 0 : index
      %c0_82 = arith.constant 0 : index
      %c0_83 = arith.constant 0 : index
      %195 = vector.load %arg19[%c0_81, %c0_82, %c0_83] : memref<2x1x64xf32, #tpu.memory_space<vmem>>, vector<2x1x64xf32>
      tpu.vector_store %arg19[%c0_81, %c0_82, %c0_83], %194 {strides = array<i32>} : memref<2x1x64xf32, #tpu.memory_space<vmem>>, vector<2x1x64xf32>,
    } else {
    }
    return
  }
  func.func @transform_0(%arg0: i32, %arg1: i32) -> (i32, i32, i32) {
    %c0_i32 = arith.constant 0 : i32
    %c0_i32_0 = arith.constant 0 : i32
    %c0_i32_1 = arith.constant 0 : i32
    return %arg0, %c0_i32, %c0_i32_0 : i32, i32, i32
  }
  func.func @transform_1(%arg0: i32, %arg1: i32) -> (i32, i32, i32) {
    %c0_i32 = arith.constant 0 : i32
    %c0_i32_0 = arith.constant 0 : i32
    %c0_i32_1 = arith.constant 0 : i32
    return %arg0, %c0_i32, %c0_i32_0 : i32, i32, i32
  }
  func.func @transform_2(%arg0: i32, %arg1: i32) -> (i32, i32, i32) {
    %c0_i32 = arith.constant 0 : i32
    %c0_i32_0 = arith.constant 0 : i32
    %c0_i32_1 = arith.constant 0 : i32
    return %arg1, %c0_i32, %c0_i32_0 : i32, i32, i32
  }
  func.func @transform_3(%arg0: i32, %arg1: i32) -> (i32, i32, i32) {
    %c0_i32 = arith.constant 0 : i32
    %c0_i32_0 = arith.constant 0 : i32
    %c0_i32_1 = arith.constant 0 : i32
    return %arg1, %c0_i32, %c0_i32_0 : i32, i32, i32
  }
  func.func @transform_4(%arg0: i32, %arg1: i32) -> (i32, i32, i32) {
    %c0_i32 = arith.constant 0 : i32
    %c0_i32_0 = arith.constant 0 : i32
    %c0_i32_1 = arith.constant 0 : i32
    return %arg1, %c0_i32, %c0_i32_0 : i32, i32, i32
  }
  func.func @transform_5(%arg0: i32, %arg1: i32) -> (i32, i32, i32) {
    %c0_i32 = arith.constant 0 : i32
    %c0_i32_0 = arith.constant 0 : i32
    %c0_i32_1 = arith.constant 0 : i32
    return %arg1, %c0_i32, %c0_i32_0 : i32, i32, i32
  }
  func.func @transform_6(%arg0: i32, %arg1: i32) -> (i32, i32, i32) {
    %c0_i32 = arith.constant 0 : i32
    %c0_i32_0 = arith.constant 0 : i32
    %c0_i32_1 = arith.constant 0 : i32
    return %arg1, %c0_i32, %c0_i32_0 : i32, i32, i32
  }
  func.func @transform_7(%arg0: i32, %arg1: i32) -> (i32, i32, i32) {
    %c0_i32 = arith.constant 0 : i32
    %c0_i32_0 = arith.constant 0 : i32
    %c0_i32_1 = arith.constant 0 : i32
    return %arg1, %c0_i32, %c0_i32_0 : i32, i32, i32
  }
  func.func @transform_8(%arg0: i32, %arg1: i32) -> (i32, i32, i32) {
    %c0_i32 = arith.constant 0 : i32
    %c0_i32_0 = arith.constant 0 : i32
    %c0_i32_1 = arith.constant 0 : i32
    return %arg1, %c0_i32, %c0_i32_0 : i32, i32, i32
  }
  func.func @transform_9(%arg0: i32, %arg1: i32) -> (i32, i32, i32) {
    %c0_i32 = arith.constant 0 : i32
    %c0_i32_0 = arith.constant 0 : i32
    %c0_i32_1 = arith.constant 0 : i32
    return %arg1, %c0_i32, %c0_i32_0 : i32, i32, i32
  }
  func.func @transform_10(%arg0: i32, %arg1: i32) -> (i32, i32, i32) {
    %c0_i32 = arith.constant 0 : i32
    %c0_i32_0 = arith.constant 0 : i32
    %c0_i32_1 = arith.constant 0 : i32
    return %arg1, %c0_i32, %c0_i32_0 : i32, i32, i32
  }
  func.func @transform_11(%arg0: i32, %arg1: i32) -> (i32, i32, i32) {
    %c0_i32 = arith.constant 0 : i32
    %c0_i32_0 = arith.constant 0 : i32
    %c0_i32_1 = arith.constant 0 : i32
    return %arg1, %c0_i32, %c0_i32_0 : i32, i32, i32
  }
  func.func @transform_12(%arg0: i32, %arg1: i32) -> (i32, i32, i32) {
    %c0_i32 = arith.constant 0 : i32
    %c0_i32_0 = arith.constant 0 : i32
    %c0_i32_1 = arith.constant 0 : i32
    return %arg1, %c0_i32, %c0_i32_0 : i32, i32, i32
  }
  func.func @transform_13(%arg0: i32, %arg1: i32) -> (i32, i32, i32) {
    %c0_i32 = arith.constant 0 : i32
    %c0_i32_0 = arith.constant 0 : i32
    %c0_i32_1 = arith.constant 0 : i32
    return %arg1, %c0_i32, %c0_i32_0 : i32, i32, i32
  }
  func.func @transform_14(%arg0: i32, %arg1: i32) -> (i32, i32) {
    %c0_i32 = arith.constant 0 : i32
    %c0_i32_0 = arith.constant 0 : i32
    %c0_i32_1 = arith.constant 0 : i32
    return %c0_i32, %c0_i32_0 : i32, i32
  }
  func.func @transform_15(%arg0: i32, %arg1: i32) -> (i32, i32) {
    %c0_i32 = arith.constant 0 : i32
    %c0_i32_0 = arith.constant 0 : i32
    %c0_i32_1 = arith.constant 0 : i32
    return %c0_i32, %c0_i32_0 : i32, i32
  }
  func.func @transform_16(%arg0: i32, %arg1: i32) -> (i32, i32) {
    %c0_i32 = arith.constant 0 : i32
    %c0_i32_0 = arith.constant 0 : i32
    %c0_i32_1 = arith.constant 0 : i32
    return %c0_i32, %c0_i32_0 : i32, i32
  }
  func.func @transform_17(%arg0: i32, %arg1: i32) -> (i32, i32, i32) {
    %c0_i32 = arith.constant 0 : i32
    %c0_i32_0 = arith.constant 0 : i32
    %c0_i32_1 = arith.constant 0 : i32
    return %arg0, %c0_i32, %c0_i32_0 : i32, i32, i32
  }
}

</mosaic_0001>

<llo_original>
// kernel: tpu_custom_call.1
$region0: #{tpu_custom_call.1}
  #allocation0 [shape = 'u32[]', space=smem, size = 0x4, offset = 0x4, fixed_abs, tag = 'smem constant byte address 0x4 - core index']
  #allocation1 [shape = 'u32[72,128]{1,0:T(1,128)}', space=vmem, size = 0x9000, scoped, tag = 'internal scratch']
  #allocation2 [shape = 'f32[2,8,32]{2,1,0:T(8,128)}', space=vmem, size = 0x2000, scoped, tag = 'scratch operand']
  %s0 = inlined_call_operand.vmem [shape: bf16[2,8,32], index: 0, kind: input, shape index: {}]
  %s1 = inlined_call_operand.vmem [shape: f32[2,1,8], index: 1, kind: input, shape index: {}]
  %s2 = inlined_call_operand.vmem [shape: f32[2,1,32], index: 2, kind: input, shape index: {}]
  %s3 = inlined_call_operand.vmem [shape: f32[2,1,32], index: 3, kind: input, shape index: {}]
  %s4 = inlined_call_operand.vmem [shape: bf16[2,32,96], index: 4, kind: input, shape index: {}]
  %s5 = inlined_call_operand.vmem [shape: f32[2,1,96], index: 5, kind: input, shape index: {}]
  %s6 = inlined_call_operand.vmem [shape: bf16[2,32,32], index: 6, kind: input, shape index: {}]
  %s7 = inlined_call_operand.vmem [shape: f32[2,1,32], index: 7, kind: input, shape index: {}]
  %s8 = inlined_call_operand.vmem [shape: f32[2,1,32], index: 8, kind: input, shape index: {}]
  %s9 = inlined_call_operand.vmem [shape: f32[2,1,32], index: 9, kind: input, shape index: {}]
  %s10 = inlined_call_operand.vmem [shape: bf16[2,32,128], index: 10, kind: input, shape index: {}]
  %s11 = inlined_call_operand.vmem [shape: f32[2,1,128], index: 11, kind: input, shape index: {}]
  %s12 = inlined_call_operand.vmem [shape: bf16[2,128,32], index: 12, kind: input, shape index: {}]
  %s13 = inlined_call_operand.vmem [shape: f32[2,1,32], index: 13, kind: input, shape index: {}]
  %s14 = inlined_call_operand.vmem [shape: f32[1,32], index: 14, kind: input, shape index: {}]
  %s15 = inlined_call_operand.vmem [shape: f32[1,32], index: 15, kind: input, shape index: {}]
  %s16 = inlined_call_operand.vmem [shape: bf16[32,64], index: 16, kind: input, shape index: {}]
  %s17 = inlined_call_operand.hbm [shape: f32[2,1,64], index: 17, kind: output, shape index: {}]
  %s18 = sld [smem:[#allocation0]]
  $region109: #{tpu_custom_call.1} parent=0
    _
  %s20 = ssub.s32 1, %s18
  %s21 = scalar_select 0, %s20, %s18
  $region1: #{tpu_custom_call.1} parent=0
    #allocation3 [shape = 'u8[1024]{0}', space=vmem, size = 0x400, scoped, tag = 'output window, operand 0, single buffered']
    #allocation4 [shape = 's32[2]{0}', space=sflag, size = 0x8, scoped, tag = 'scoped memory for tpu_custom_call.1']
    %22 = vsyncpa [#allocation4], 0
    loop: start=0, step=1, limit=4
    $region2: #{tpu_custom_call.1} parent=1 // loop_pre_header
      _
    $region3: #{tpu_custom_call.1} parent=1 // loop_header
      %s24 = sphi 0, %s28
      %p25 = scmp.ge.s32.totalorder %s24, 4
      %s31 = sphi 0, %s43
      %s32 = sphi 0, %s39
      %s33 = sphi 0, %s31
      %s34 = sphi 0, %s32
      %s35 = sphi 0, %s33
      %s36 = sphi 0, %s34
      %s46 = sphi 0, %s48
      %s49 = sphi 0, %s46
      %s50 = sphi 0, %s49
      %s66 = sphi 0, %s50
      %s72 = sphi 0, %s74
      %s75 = sphi 0, %s72
      %s76 = sphi 0, %s75
      %s92 = sphi 0, %s76
      %s98 = sphi 0, %s100
      %s101 = sphi 0, %s98
      %s102 = sphi 0, %s101
      %s118 = sphi 0, %s102
      %s124 = sphi 0, %s126
      %s127 = sphi 0, %s124
      %s128 = sphi 0, %s127
      %s144 = sphi 0, %s128
      %s150 = sphi 0, %s152
      %s153 = sphi 0, %s150
      %s154 = sphi 0, %s153
      %s170 = sphi 0, %s154
      %s176 = sphi 0, %s178
      %s179 = sphi 0, %s176
      %s180 = sphi 0, %s179
      %s196 = sphi 0, %s180
      %s202 = sphi 0, %s204
      %s205 = sphi 0, %s202
      %s206 = sphi 0, %s205
      %s222 = sphi 0, %s206
      %s228 = sphi 0, %s230
      %s231 = sphi 0, %s228
      %s232 = sphi 0, %s231
      %s248 = sphi 0, %s232
      %s254 = sphi 0, %s256
      %s257 = sphi 0, %s254
      %s258 = sphi 0, %s257
      %s274 = sphi 0, %s258
      %s280 = sphi 0, %s282
      %s283 = sphi 0, %s280
      %s284 = sphi 0, %s283
      %s300 = sphi 0, %s284
      %s306 = sphi 0, %s308
      %s309 = sphi 0, %s306
      %s310 = sphi 0, %s309
      %s326 = sphi 0, %s310
      %s332 = sphi 0, %s334
      %s335 = sphi 0, %s332
      %s336 = sphi 0, %s335
      %s352 = sphi 0, %s336
      %s358 = sphi 0, %s360
      %s361 = sphi 0, %s358
      %s362 = sphi 0, %s361
      %s378 = sphi 0, %s362
      %s384 = sphi 0, %s386
      %s387 = sphi 0, %s384
      %s388 = sphi 0, %s387
      %s404 = sphi 0, %s388
      %s408 = sphi 0, %s408
      %s410 = sphi 0, %s408
      %s411 = sphi 0, %s410
      %s425 = sphi 0, %s411
      %s429 = sphi 0, %s429
      %s431 = sphi 0, %s429
      %s432 = sphi 0, %s431
      %s446 = sphi 0, %s432
      %s450 = sphi 0, %s450
      %s452 = sphi 0, %s450
      %s453 = sphi 0, %s452
      %s467 = sphi 0, %s453
      %s473 = sphi 0, %s475
      %s476 = sphi 0, %s473
      %s477 = sphi 0, %s476
      %s493 = sphi 0, %s477
    $region4: #{tpu_custom_call.1} parent=1 // loop_header_branch
      %27 = sbr.rel (%p25) target = $region8
    $region5: #{tpu_custom_call.1} parent=1 // loop_body
      %s29 = ssub.s32 %s24, 1
      %s30 = ssub.s32 %s24, 2
      %s37 = sadd.s32 1, %s32
      %p38 = scmp.ge.s32.totalorder %s37, 2
      %s39 = scalar_select %p38, 0, %s37
      %s40 = sadd.s32 1, %s31
      %s41 = scalar_select %p38, %s40, %s31
      %p42 = scmp.ge.s32.totalorder %s41, 1
      %s43 = scalar_select %p42, 0, %s41
      %s44 = ssub.s32 %s31, %s43
      %p45 = scmp.eq.s32.totalorder %s44, 0
      %s47 = sadd.s32 %s46, 1
      %s48 = scalar_select %p45, %s46, %s47
      %p51 = pneg %p45
      %p52 = scmp.eq.s32.totalorder %s24, 1
      %p53 = por %p51, %p52
      %p54 = scmp.ne.s32.totalorder %s46, %s49
      %p55 = scmp.eq.s32.totalorder %s24, 0
      %p56 = por %p54, %p55
      %p57 = scmp.ne.s32.totalorder %s46, %s49
      %p58 = scmp.eq.s32.totalorder %s29, 1
      %p59 = por %p57, %p58
      %p60 = scmp.ne.s32.totalorder %s49, %s50
      %p61 = scmp.eq.s32.totalorder %s29, 0
      %p62 = por %p60, %p61
      %p63 = scmp.ne.s32.totalorder %s49, %s50
      %p64 = scmp.eq.s32.totalorder %s30, 1
      %p65 = por %p63, %p64
      %p67 = scmp.ne.s32.totalorder %s50, %s66
      %p68 = scmp.eq.s32.totalorder %s30, 0
      %p69 = por %p67, %p68
      %s70 = ssub.s32 %s31, %s43
      %p71 = scmp.eq.s32.totalorder %s70, 0
      %s73 = sadd.s32 %s72, 1
      %s74 = scalar_select %p71, %s72, %s73
      %p77 = pneg %p71
      %p78 = scmp.eq.s32.totalorder %s24, 1
      %p79 = por %p77, %p78
      %p80 = scmp.ne.s32.totalorder %s72, %s75
      %p81 = scmp.eq.s32.totalorder %s24, 0
      %p82 = por %p80, %p81
      %p83 = scmp.ne.s32.totalorder %s72, %s75
      %p84 = scmp.eq.s32.totalorder %s29, 1
      %p85 = por %p83, %p84
      %p86 = scmp.ne.s32.totalorder %s75, %s76
      %p87 = scmp.eq.s32.totalorder %s29, 0
      %p88 = por %p86, %p87
      %p89 = scmp.ne.s32.totalorder %s75, %s76
      %p90 = scmp.eq.s32.totalorder %s30, 1
      %p91 = por %p89, %p90
      %p93 = scmp.ne.s32.totalorder %s76, %s92
      %p94 = scmp.eq.s32.totalorder %s30, 0
      %p95 = por %p93, %p94
      %s96 = ssub.s32 %s32, %s39
      %p97 = scmp.eq.s32.totalorder %s96, 0
      %s99 = sadd.s32 %s98, 1
      %s100 = scalar_select %p97, %s98, %s99
      %p103 = pneg %p97
      %p104 = scmp.eq.s32.totalorder %s24, 1
      %p105 = por %p103, %p104
      %p106 = scmp.ne.s32.totalorder %s98, %s101
      %p107 = scmp.eq.s32.totalorder %s24, 0
      %p108 = por %p106, %p107
      %p109 = scmp.ne.s32.totalorder %s98, %s101
      %p110 = scmp.eq.s32.totalorder %s29, 1
      %p111 = por %p109, %p110
      %p112 = scmp.ne.s32.totalorder %s101, %s102
      %p113 = scmp.eq.s32.totalorder %s29, 0
      %p114 = por %p112, %p113
      %p115 = scmp.ne.s32.totalorder %s101, %s102
      %p116 = scmp.eq.s32.totalorder %s30, 1
      %p117 = por %p115, %p116
      %p119 = scmp.ne.s32.totalorder %s102, %s118
      %p120 = scmp.eq.s32.totalorder %s30, 0
      %p121 = por %p119, %p120
      %s122 = ssub.s32 %s32, %s39
      %p123 = scmp.eq.s32.totalorder %s122, 0
      %s125 = sadd.s32 %s124, 1
      %s126 = scalar_select %p123, %s124, %s125
      %p129 = pneg %p123
      %p130 = scmp.eq.s32.totalorder %s24, 1
      %p131 = por %p129, %p130
      %p132 = scmp.ne.s32.totalorder %s124, %s127
      %p133 = scmp.eq.s32.totalorder %s24, 0
      %p134 = por %p132, %p133
      %p135 = scmp.ne.s32.totalorder %s124, %s127
      %p136 = scmp.eq.s32.totalorder %s29, 1
      %p137 = por %p135, %p136
      %p138 = scmp.ne.s32.totalorder %s127, %s128
      %p139 = scmp.eq.s32.totalorder %s29, 0
      %p140 = por %p138, %p139
      %p141 = scmp.ne.s32.totalorder %s127, %s128
      %p142 = scmp.eq.s32.totalorder %s30, 1
      %p143 = por %p141, %p142
      %p145 = scmp.ne.s32.totalorder %s128, %s144
      %p146 = scmp.eq.s32.totalorder %s30, 0
      %p147 = por %p145, %p146
      %s148 = ssub.s32 %s32, %s39
      %p149 = scmp.eq.s32.totalorder %s148, 0
      %s151 = sadd.s32 %s150, 1
      %s152 = scalar_select %p149, %s150, %s151
      %p155 = pneg %p149
      %p156 = scmp.eq.s32.totalorder %s24, 1
      %p157 = por %p155, %p156
      %p158 = scmp.ne.s32.totalorder %s150, %s153
      %p159 = scmp.eq.s32.totalorder %s24, 0
      %p160 = por %p158, %p159
      %p161 = scmp.ne.s32.totalorder %s150, %s153
      %p162 = scmp.eq.s32.totalorder %s29, 1
      %p163 = por %p161, %p162
      %p164 = scmp.ne.s32.totalorder %s153, %s154
      %p165 = scmp.eq.s32.totalorder %s29, 0
      %p166 = por %p164, %p165
      %p167 = scmp.ne.s32.totalorder %s153, %s154
      %p168 = scmp.eq.s32.totalorder %s30, 1
      %p169 = por %p167, %p168
      %p171 = scmp.ne.s32.totalorder %s154, %s170
      %p172 = scmp.eq.s32.totalorder %s30, 0
      %p173 = por %p171, %p172
      %s174 = ssub.s32 %s32, %s39
      %p175 = scmp.eq.s32.totalorder %s174, 0
      %s177 = sadd.s32 %s176, 1
      %s178 = scalar_select %p175, %s176, %s177
      %p181 = pneg %p175
      %p182 = scmp.eq.s32.totalorder %s24, 1
      %p183 = por %p181, %p182
      %p184 = scmp.ne.s32.totalorder %s176, %s179
      %p185 = scmp.eq.s32.totalorder %s24, 0
      %p186 = por %p184, %p185
      %p187 = scmp.ne.s32.totalorder %s176, %s179
      %p188 = scmp.eq.s32.totalorder %s29, 1
      %p189 = por %p187, %p188
      %p190 = scmp.ne.s32.totalorder %s179, %s180
      %p191 = scmp.eq.s32.totalorder %s29, 0
      %p192 = por %p190, %p191
      %p193 = scmp.ne.s32.totalorder %s179, %s180
      %p194 = scmp.eq.s32.totalorder %s30, 1
      %p195 = por %p193, %p194
      %p197 = scmp.ne.s32.totalorder %s180, %s196
      %p198 = scmp.eq.s32.totalorder %s30, 0
      %p199 = por %p197, %p198
      %s200 = ssub.s32 %s32, %s39
      %p201 = scmp.eq.s32.totalorder %s200, 0
      %s203 = sadd.s32 %s202, 1
      %s204 = scalar_select %p201, %s202, %s203
      %p207 = pneg %p201
      %p208 = scmp.eq.s32.totalorder %s24, 1
      %p209 = por %p207, %p208
      %p210 = scmp.ne.s32.totalorder %s202, %s205
      %p211 = scmp.eq.s32.totalorder %s24, 0
      %p212 = por %p210, %p211
      %p213 = scmp.ne.s32.totalorder %s202, %s205
      %p214 = scmp.eq.s32.totalorder %s29, 1
      %p215 = por %p213, %p214
      %p216 = scmp.ne.s32.totalorder %s205, %s206
      %p217 = scmp.eq.s32.totalorder %s29, 0
      %p218 = por %p216, %p217
      %p219 = scmp.ne.s32.totalorder %s205, %s206
      %p220 = scmp.eq.s32.totalorder %s30, 1
      %p221 = por %p219, %p220
      %p223 = scmp.ne.s32.totalorder %s206, %s222
      %p224 = scmp.eq.s32.totalorder %s30, 0
      %p225 = por %p223, %p224
      %s226 = ssub.s32 %s32, %s39
      %p227 = scmp.eq.s32.totalorder %s226, 0
      %s229 = sadd.s32 %s228, 1
      %s230 = scalar_select %p227, %s228, %s229
      %p233 = pneg %p227
      %p234 = scmp.eq.s32.totalorder %s24, 1
      %p235 = por %p233, %p234
      %p236 = scmp.ne.s32.totalorder %s228, %s231
      %p237 = scmp.eq.s32.totalorder %s24, 0
      %p238 = por %p236, %p237
      %p239 = scmp.ne.s32.totalorder %s228, %s231
      %p240 = scmp.eq.s32.totalorder %s29, 1
      %p241 = por %p239, %p240
      %p242 = scmp.ne.s32.totalorder %s231, %s232
      %p243 = scmp.eq.s32.totalorder %s29, 0
      %p244 = por %p242, %p243
      %p245 = scmp.ne.s32.totalorder %s231, %s232
      %p246 = scmp.eq.s32.totalorder %s30, 1
      %p247 = por %p245, %p246
      %p249 = scmp.ne.s32.totalorder %s232, %s248
      %p250 = scmp.eq.s32.totalorder %s30, 0
      %p251 = por %p249, %p250
      %s252 = ssub.s32 %s32, %s39
      %p253 = scmp.eq.s32.totalorder %s252, 0
      %s255 = sadd.s32 %s254, 1
      %s256 = scalar_select %p253, %s254, %s255
      %p259 = pneg %p253
      %p260 = scmp.eq.s32.totalorder %s24, 1
      %p261 = por %p259, %p260
      %p262 = scmp.ne.s32.totalorder %s254, %s257
      %p263 = scmp.eq.s32.totalorder %s24, 0
      %p264 = por %p262, %p263
      %p265 = scmp.ne.s32.totalorder %s254, %s257
      %p266 = scmp.eq.s32.totalorder %s29, 1
      %p267 = por %p265, %p266
      %p268 = scmp.ne.s32.totalorder %s257, %s258
      %p269 = scmp.eq.s32.totalorder %s29, 0
      %p270 = por %p268, %p269
      %p271 = scmp.ne.s32.totalorder %s257, %s258
      %p272 = scmp.eq.s32.totalorder %s30, 1
      %p273 = por %p271, %p272
      %p275 = scmp.ne.s32.totalorder %s258, %s274
      %p276 = scmp.eq.s32.totalorder %s30, 0
      %p277 = por %p275, %p276
      %s278 = ssub.s32 %s32, %s39
      %p279 = scmp.eq.s32.totalorder %s278, 0
      %s281 = sadd.s32 %s280, 1
      %s282 = scalar_select %p279, %s280, %s281
      %p285 = pneg %p279
      %p286 = scmp.eq.s32.totalorder %s24, 1
      %p287 = por %p285, %p286
      %p288 = scmp.ne.s32.totalorder %s280, %s283
      %p289 = scmp.eq.s32.totalorder %s24, 0
      %p290 = por %p288, %p289
      %p291 = scmp.ne.s32.totalorder %s280, %s283
      %p292 = scmp.eq.s32.totalorder %s29, 1
      %p293 = por %p291, %p292
      %p294 = scmp.ne.s32.totalorder %s283, %s284
      %p295 = scmp.eq.s32.totalorder %s29, 0
      %p296 = por %p294, %p295
      %p297 = scmp.ne.s32.totalorder %s283, %s284
      %p298 = scmp.eq.s32.totalorder %s30, 1
      %p299 = por %p297, %p298
      %p301 = scmp.ne.s32.totalorder %s284, %s300
      %p302 = scmp.eq.s32.totalorder %s30, 0
      %p303 = por %p301, %p302
      %s304 = ssub.s32 %s32, %s39
      %p305 = scmp.eq.s32.totalorder %s304, 0
      %s307 = sadd.s32 %s306, 1
      %s308 = scalar_select %p305, %s306, %s307
      %p311 = pneg %p305
      %p312 = scmp.eq.s32.totalorder %s24, 1
      %p313 = por %p311, %p312
      %p314 = scmp.ne.s32.totalorder %s306, %s309
      %p315 = scmp.eq.s32.totalorder %s24, 0
      %p316 = por %p314, %p315
      %p317 = scmp.ne.s32.totalorder %s306, %s309
      %p318 = scmp.eq.s32.totalorder %s29, 1
      %p319 = por %p317, %p318
      %p320 = scmp.ne.s32.totalorder %s309, %s310
      %p321 = scmp.eq.s32.totalorder %s29, 0
      %p322 = por %p320, %p321
      %p323 = scmp.ne.s32.totalorder %s309, %s310
      %p324 = scmp.eq.s32.totalorder %s30, 1
      %p325 = por %p323, %p324
      %p327 = scmp.ne.s32.totalorder %s310, %s326
      %p328 = scmp.eq.s32.totalorder %s30, 0
      %p329 = por %p327, %p328
      %s330 = ssub.s32 %s32, %s39
      %p331 = scmp.eq.s32.totalorder %s330, 0
      %s333 = sadd.s32 %s332, 1
      %s334 = scalar_select %p331, %s332, %s333
      %p337 = pneg %p331
      %p338 = scmp.eq.s32.totalorder %s24, 1
      %p339 = por %p337, %p338
      %p340 = scmp.ne.s32.totalorder %s332, %s335
      %p341 = scmp.eq.s32.totalorder %s24, 0
      %p342 = por %p340, %p341
      %p343 = scmp.ne.s32.totalorder %s332, %s335
      %p344 = scmp.eq.s32.totalorder %s29, 1
      %p345 = por %p343, %p344
      %p346 = scmp.ne.s32.totalorder %s335, %s336
      %p347 = scmp.eq.s32.totalorder %s29, 0
      %p348 = por %p346, %p347
      %p349 = scmp.ne.s32.totalorder %s335, %s336
      %p350 = scmp.eq.s32.totalorder %s30, 1
      %p351 = por %p349, %p350
      %p353 = scmp.ne.s32.totalorder %s336, %s352
      %p354 = scmp.eq.s32.totalorder %s30, 0
      %p355 = por %p353, %p354
      %s356 = ssub.s32 %s32, %s39
      %p357 = scmp.eq.s32.totalorder %s356, 0
      %s359 = sadd.s32 %s358, 1
      %s360 = scalar_select %p357, %s358, %s359
      %p363 = pneg %p357
      %p364 = scmp.eq.s32.totalorder %s24, 1
      %p365 = por %p363, %p364
      %p366 = scmp.ne.s32.totalorder %s358, %s361
      %p367 = scmp.eq.s32.totalorder %s24, 0
      %p368 = por %p366, %p367
      %p369 = scmp.ne.s32.totalorder %s358, %s361
      %p370 = scmp.eq.s32.totalorder %s29, 1
      %p371 = por %p369, %p370
      %p372 = scmp.ne.s32.totalorder %s361, %s362
      %p373 = scmp.eq.s32.totalorder %s29, 0
      %p374 = por %p372, %p373
      %p375 = scmp.ne.s32.totalorder %s361, %s362
      %p376 = scmp.eq.s32.totalorder %s30, 1
      %p377 = por %p375, %p376
      %p379 = scmp.ne.s32.totalorder %s362, %s378
      %p380 = scmp.eq.s32.totalorder %s30, 0
      %p381 = por %p379, %p380
      %s382 = ssub.s32 %s32, %s39
      %p383 = scmp.eq.s32.totalorder %s382, 0
      %s385 = sadd.s32 %s384, 1
      %s386 = scalar_select %p383, %s384, %s385
      %p389 = pneg %p383
      %p390 = scmp.eq.s32.totalorder %s24, 1
      %p391 = por %p389, %p390
      %p392 = scmp.ne.s32.totalorder %s384, %s387
      %p393 = scmp.eq.s32.totalorder %s24, 0
      %p394 = por %p392, %p393
      %p395 = scmp.ne.s32.totalorder %s384, %s387
      %p396 = scmp.eq.s32.totalorder %s29, 1
      %p397 = por %p395, %p396
      %p398 = scmp.ne.s32.totalorder %s387, %s388
      %p399 = scmp.eq.s32.totalorder %s29, 0
      %p400 = por %p398, %p399
      %p401 = scmp.ne.s32.totalorder %s387, %s388
      %p402 = scmp.eq.s32.totalorder %s30, 1
      %p403 = por %p401, %p402
      %p405 = scmp.ne.s32.totalorder %s388, %s404
      %p406 = scmp.eq.s32.totalorder %s30, 0
      %p407 = por %p405, %p406
      %s409 = sadd.s32 %s408, 1
      %p412 = scmp.eq.s32.totalorder %s24, 1
      %p413 = scmp.ne.s32.totalorder %s408, %s410
      %p414 = scmp.eq.s32.totalorder %s24, 0
      %p415 = por %p413, %p414
      %p416 = scmp.ne.s32.totalorder %s408, %s410
      %p417 = scmp.eq.s32.totalorder %s29, 1
      %p418 = por %p416, %p417
      %p419 = scmp.ne.s32.totalorder %s410, %s411
      %p420 = scmp.eq.s32.totalorder %s29, 0
      %p421 = por %p419, %p420
      %p422 = scmp.ne.s32.totalorder %s410, %s411
      %p423 = scmp.eq.s32.totalorder %s30, 1
      %p424 = por %p422, %p423
      %p426 = scmp.ne.s32.totalorder %s411, %s425
      %p427 = scmp.eq.s32.totalorder %s30, 0
      %p428 = por %p426, %p427
      %s430 = sadd.s32 %s429, 1
      %p433 = scmp.eq.s32.totalorder %s24, 1
      %p434 = scmp.ne.s32.totalorder %s429, %s431
      %p435 = scmp.eq.s32.totalorder %s24, 0
      %p436 = por %p434, %p435
      %p437 = scmp.ne.s32.totalorder %s429, %s431
      %p438 = scmp.eq.s32.totalorder %s29, 1
      %p439 = por %p437, %p438
      %p440 = scmp.ne.s32.totalorder %s431, %s432
      %p441 = scmp.eq.s32.totalorder %s29, 0
      %p442 = por %p440, %p441
      %p443 = scmp.ne.s32.totalorder %s431, %s432
      %p444 = scmp.eq.s32.totalorder %s30, 1
      %p445 = por %p443, %p444
      %p447 = scmp.ne.s32.totalorder %s432, %s446
      %p448 = scmp.eq.s32.totalorder %s30, 0
      %p449 = por %p447, %p448
      %s451 = sadd.s32 %s450, 1
      %p454 = scmp.eq.s32.totalorder %s24, 1
      %p455 = scmp.ne.s32.totalorder %s450, %s452
      %p456 = scmp.eq.s32.totalorder %s24, 0
      %p457 = por %p455, %p456
      %p458 = scmp.ne.s32.totalorder %s450, %s452
      %p459 = scmp.eq.s32.totalorder %s29, 1
      %p460 = por %p458, %p459
      %p461 = scmp.ne.s32.totalorder %s452, %s453
      %p462 = scmp.eq.s32.totalorder %s29, 0
      %p463 = por %p461, %p462
      %p464 = scmp.ne.s32.totalorder %s452, %s453
      %p465 = scmp.eq.s32.totalorder %s30, 1
      %p466 = por %p464, %p465
      %p468 = scmp.ne.s32.totalorder %s453, %s467
      %p469 = scmp.eq.s32.totalorder %s30, 0
      %p470 = por %p468, %p469
      %s471 = ssub.s32 %s31, %s43
      %p472 = scmp.eq.s32.totalorder %s471, 0
      %s474 = sadd.s32 %s473, 1
      %s475 = scalar_select %p472, %s473, %s474
      %p478 = pneg %p472
      %p479 = scmp.eq.s32.totalorder %s24, 1
      %p480 = por %p478, %p479
      %p481 = scmp.ne.s32.totalorder %s473, %s476
      %p482 = scmp.eq.s32.totalorder %s24, 0
      %p483 = por %p481, %p482
      %p484 = scmp.ne.s32.totalorder %s473, %s476
      %p485 = scmp.eq.s32.totalorder %s29, 1
      %p486 = por %p484, %p485
      %p487 = scmp.ne.s32.totalorder %s476, %s477
      %p488 = scmp.eq.s32.totalorder %s29, 0
      %p489 = por %p487, %p488
      %p490 = scmp.ne.s32.totalorder %s476, %s477
      %p491 = scmp.eq.s32.totalorder %s30, 1
      %p492 = por %p490, %p491
      %p494 = scmp.ne.s32.totalorder %s477, %s493
      %p495 = scmp.eq.s32.totalorder %s30, 0
      %p496 = por %p494, %p495
      %p497 = scmp.le.s32.totalorder 1, %s24
      %p498 = scmp.lt.s32.totalorder %s24, 3
      %p499 = pnand %p497, %p498
      %p500 = pneg %p499
      // Predicated region
      $region9: #{tpu_custom_call.1} parent=5 // pred_check
        _
      $region10: #{tpu_custom_call.1} parent=5 // pred_check_branch
        %502 = sbr.rel (%p499) target = $region12
      $region11: #{tpu_custom_call.1} parent=5 // pred_region
        %s503 = ssub.s32 %s24, 1
        // Predicated region
        $region13: #{tpu_custom_call.1} parent=11 // pred_check
          %p504 = pneg %p62
        $region14: #{tpu_custom_call.1} parent=11 // pred_check_branch
          %506 = sbr.rel (%p504) target = $region16
        $region15: #{tpu_custom_call.1} parent=11 // pred_region
          %s507 = smul.u32 2, %s33
          %p508 = scmp.lt.s32.totalorder %s507, 1
          %s509 = scalar_select %p508, %s507, 1
          %s510 = smul.addr %s509, 4
          %s511 = scalar_lea.vmem %s0, %s510
          %s512 = smul.u32 2, %s33
        $region16: #{tpu_custom_call.1} parent=11 // pred_fallthru
          _
        // Predicated region
        $region17: #{tpu_custom_call.1} parent=11 // pred_check
          %p513 = pneg %p88
        $region18: #{tpu_custom_call.1} parent=11 // pred_check_branch
          %515 = sbr.rel (%p513) target = $region20
        $region19: #{tpu_custom_call.1} parent=11 // pred_region
          %s516 = smul.u32 2, %s33
          %p517 = scmp.lt.s32.totalorder %s516, 1
          %s518 = scalar_select %p517, %s516, 1
          %s519 = scalar_lea.vmem %s1, %s518
          %s520 = smul.u32 2, %s33
        $region20: #{tpu_custom_call.1} parent=11 // pred_fallthru
          _
        // Predicated region
        $region21: #{tpu_custom_call.1} parent=11 // pred_check
          %p521 = pneg %p421
        $region22: #{tpu_custom_call.1} parent=11 // pred_check_branch
          %523 = sbr.rel (%p521) target = $region24
        $region23: #{tpu_custom_call.1} parent=11 // pred_region
          _
        $region24: #{tpu_custom_call.1} parent=11 // pred_fallthru
          _
        // Predicated region
        $region25: #{tpu_custom_call.1} parent=11 // pred_check
          %p524 = pneg %p442
        $region26: #{tpu_custom_call.1} parent=11 // pred_check_branch
          %526 = sbr.rel (%p524) target = $region28
        $region27: #{tpu_custom_call.1} parent=11 // pred_region
          _
        $region28: #{tpu_custom_call.1} parent=11 // pred_fallthru
          _
        // Predicated region
        $region29: #{tpu_custom_call.1} parent=11 // pred_check
          %p527 = pneg %p463
        $region30: #{tpu_custom_call.1} parent=11 // pred_check_branch
          %529 = sbr.rel (%p527) target = $region32
        $region31: #{tpu_custom_call.1} parent=11 // pred_region
          _
        $region32: #{tpu_custom_call.1} parent=11 // pred_fallthru
          _
      $region12: #{tpu_custom_call.1} parent=5 // pred_fallthru
        _
      %p530 = scmp.lt.s32.totalorder %s24, 2
      // Predicated region
      $region33: #{tpu_custom_call.1} parent=5 // pred_check
        %p531 = pneg %p530
      $region34: #{tpu_custom_call.1} parent=5 // pred_check_branch
        %533 = sbr.rel (%p531) target = $region36
      $region35: #{tpu_custom_call.1} parent=5 // pred_region
        // Predicated region
        $region37: #{tpu_custom_call.1} parent=35 // pred_check
          %p534 = pneg %p108
        $region38: #{tpu_custom_call.1} parent=35 // pred_check_branch
          %536 = sbr.rel (%p534) target = $region40
        $region39: #{tpu_custom_call.1} parent=35 // pred_region
          %p537 = scmp.lt.s32.totalorder %s32, 1
          %s538 = scalar_select %p537, %s32, 1
          %s539 = scalar_lea.vmem %s2, %s538
        $region40: #{tpu_custom_call.1} parent=35 // pred_fallthru
          _
        // Predicated region
        $region41: #{tpu_custom_call.1} parent=35 // pred_check
          %p540 = pneg %p134
        $region42: #{tpu_custom_call.1} parent=35 // pred_check_branch
          %542 = sbr.rel (%p540) target = $region44
        $region43: #{tpu_custom_call.1} parent=35 // pred_region
          %p543 = scmp.lt.s32.totalorder %s32, 1
          %s544 = scalar_select %p543, %s32, 1
          %s545 = scalar_lea.vmem %s3, %s544
        $region44: #{tpu_custom_call.1} parent=35 // pred_fallthru
          _
        // Predicated region
        $region45: #{tpu_custom_call.1} parent=35 // pred_check
          %p546 = pneg %p160
        $region46: #{tpu_custom_call.1} parent=35 // pred_check_branch
          %548 = sbr.rel (%p546) target = $region48
        $region47: #{tpu_custom_call.1} parent=35 // pred_region
          %p549 = scmp.lt.s32.totalorder %s32, 1
          %s550 = scalar_select %p549, %s32, 1
          %s551 = smul.addr %s550, 4
          %s552 = smul.addr %s551, 4
          %s553 = scalar_lea.vmem %s4, %s552
        $region48: #{tpu_custom_call.1} parent=35 // pred_fallthru
          _
        // Predicated region
        $region49: #{tpu_custom_call.1} parent=35 // pred_check
          %p554 = pneg %p186
        $region50: #{tpu_custom_call.1} parent=35 // pred_check_branch
          %556 = sbr.rel (%p554) target = $region52
        $region51: #{tpu_custom_call.1} parent=35 // pred_region
          %p557 = scmp.lt.s32.totalorder %s32, 1
          %s558 = scalar_select %p557, %s32, 1
          %s559 = scalar_lea.vmem %s5, %s558
        $region52: #{tpu_custom_call.1} parent=35 // pred_fallthru
          _
        // Predicated region
        $region53: #{tpu_custom_call.1} parent=35 // pred_check
          %p560 = pneg %p212
        $region54: #{tpu_custom_call.1} parent=35 // pred_check_branch
          %562 = sbr.rel (%p560) target = $region56
        $region55: #{tpu_custom_call.1} parent=35 // pred_region
          %p563 = scmp.lt.s32.totalorder %s32, 1
          %s564 = scalar_select %p563, %s32, 1
          %s565 = smul.addr %s564, 4
          %s566 = smul.addr %s565, 4
          %s567 = scalar_lea.vmem %s6, %s566
        $region56: #{tpu_custom_call.1} parent=35 // pred_fallthru
          _
        // Predicated region
        $region57: #{tpu_custom_call.1} parent=35 // pred_check
          %p568 = pneg %p238
        $region58: #{tpu_custom_call.1} parent=35 // pred_check_branch
          %570 = sbr.rel (%p568) target = $region60
        $region59: #{tpu_custom_call.1} parent=35 // pred_region
          %p571 = scmp.lt.s32.totalorder %s32, 1
          %s572 = scalar_select %p571, %s32, 1
          %s573 = scalar_lea.vmem %s7, %s572
        $region60: #{tpu_custom_call.1} parent=35 // pred_fallthru
          _
        // Predicated region
        $region61: #{tpu_custom_call.1} parent=35 // pred_check
          %p574 = pneg %p264
        $region62: #{tpu_custom_call.1} parent=35 // pred_check_branch
          %576 = sbr.rel (%p574) target = $region64
        $region63: #{tpu_custom_call.1} parent=35 // pred_region
          %p577 = scmp.lt.s32.totalorder %s32, 1
          %s578 = scalar_select %p577, %s32, 1
          %s579 = scalar_lea.vmem %s8, %s578
        $region64: #{tpu_custom_call.1} parent=35 // pred_fallthru
          _
        // Predicated region
        $region65: #{tpu_custom_call.1} parent=35 // pred_check
          %p580 = pneg %p290
        $region66: #{tpu_custom_call.1} parent=35 // pred_check_branch
          %582 = sbr.rel (%p580) target = $region68
        $region67: #{tpu_custom_call.1} parent=35 // pred_region
          %p583 = scmp.lt.s32.totalorder %s32, 1
          %s584 = scalar_select %p583, %s32, 1
          %s585 = scalar_lea.vmem %s9, %s584
        $region68: #{tpu_custom_call.1} parent=35 // pred_fallthru
          _
        // Predicated region
        $region69: #{tpu_custom_call.1} parent=35 // pred_check
          %p586 = pneg %p316
        $region70: #{tpu_custom_call.1} parent=35 // pred_check_branch
          %588 = sbr.rel (%p586) target = $region72
        $region71: #{tpu_custom_call.1} parent=35 // pred_region
          %p589 = scmp.lt.s32.totalorder %s32, 1
          %s590 = scalar_select %p589, %s32, 1
          %s591 = smul.addr %s590, 4
          %s592 = smul.addr %s591, 4
          %s593 = scalar_lea.vmem %s10, %s592
        $region72: #{tpu_custom_call.1} parent=35 // pred_fallthru
          _
        // Predicated region
        $region73: #{tpu_custom_call.1} parent=35 // pred_check
          %p594 = pneg %p342
        $region74: #{tpu_custom_call.1} parent=35 // pred_check_branch
          %596 = sbr.rel (%p594) target = $region76
        $region75: #{tpu_custom_call.1} parent=35 // pred_region
          %p597 = scmp.lt.s32.totalorder %s32, 1
          %s598 = scalar_select %p597, %s32, 1
          %s599 = scalar_lea.vmem %s11, %s598
        $region76: #{tpu_custom_call.1} parent=35 // pred_fallthru
          _
        // Predicated region
        $region77: #{tpu_custom_call.1} parent=35 // pred_check
          %p600 = pneg %p368
        $region78: #{tpu_custom_call.1} parent=35 // pred_check_branch
          %602 = sbr.rel (%p600) target = $region80
        $region79: #{tpu_custom_call.1} parent=35 // pred_region
          %p603 = scmp.lt.s32.totalorder %s32, 1
          %s604 = scalar_select %p603, %s32, 1
          %s605 = smul.addr %s604, 16
          %s606 = smul.addr %s605, 4
          %s607 = scalar_lea.vmem %s12, %s606
        $region80: #{tpu_custom_call.1} parent=35 // pred_fallthru
          _
        // Predicated region
        $region81: #{tpu_custom_call.1} parent=35 // pred_check
          %p608 = pneg %p394
        $region82: #{tpu_custom_call.1} parent=35 // pred_check_branch
          %610 = sbr.rel (%p608) target = $region84
        $region83: #{tpu_custom_call.1} parent=35 // pred_region
          %p611 = scmp.lt.s32.totalorder %s32, 1
          %s612 = scalar_select %p611, %s32, 1
          %s613 = scalar_lea.vmem %s13, %s612
        $region84: #{tpu_custom_call.1} parent=35 // pred_fallthru
          _
      $region36: #{tpu_custom_call.1} parent=5 // pred_fallthru
        _
      %p614 = scmp.le.s32.totalorder 1, %s24
      %p615 = scmp.lt.s32.totalorder %s24, 3
      %p616 = pnand %p614, %p615
      %p617 = pneg %p616
      // Predicated region
      $region85: #{tpu_custom_call.1} parent=5 // pred_check
        _
      $region86: #{tpu_custom_call.1} parent=5 // pred_check_branch
        %619 = sbr.rel (%p616) target = $region88
      $region87: #{tpu_custom_call.1} parent=5 // pred_region
        %s620 = ssub.s32 %s24, 1
        %s621 = smul.u32 2, %s33
        %p622 = scmp.lt.s32.totalorder %s621, 1
        %s623 = scalar_select %p622, %s621, 1
        %s624 = smul.addr %s623, 4
        %s625 = scalar_lea.vmem %s0, %s624
        %p626 = pneg %p62
        %p627 = pneg %p59
        %s628 = smul.u32 2, %s33
        %p629 = scmp.lt.s32.totalorder %s628, 1
        %s630 = scalar_select %p629, %s628, 1
        %s631 = scalar_lea.vmem %s1, %s630
        %p632 = pneg %p88
        %p633 = pneg %p85
        %p634 = scmp.lt.s32.totalorder %s34, 1
        %s635 = scalar_select %p634, %s34, 1
        %s636 = scalar_lea.vmem %s2, %s635
        %p637 = pneg %p114
        %p638 = pneg %p111
        %p639 = scmp.lt.s32.totalorder %s34, 1
        %s640 = scalar_select %p639, %s34, 1
        %s641 = scalar_lea.vmem %s3, %s640
        %p642 = pneg %p140
        %p643 = pneg %p137
        %p644 = scmp.lt.s32.totalorder %s34, 1
        %s645 = scalar_select %p644, %s34, 1
        %s646 = smul.addr %s645, 4
        %s647 = smul.addr %s646, 4
        %s648 = scalar_lea.vmem %s4, %s647
        %p649 = pneg %p166
        %p650 = pneg %p163
        %p651 = scmp.lt.s32.totalorder %s34, 1
        %s652 = scalar_select %p651, %s34, 1
        %s653 = scalar_lea.vmem %s5, %s652
        %p654 = pneg %p192
        %p655 = pneg %p189
        %p656 = scmp.lt.s32.totalorder %s34, 1
        %s657 = scalar_select %p656, %s34, 1
        %s658 = smul.addr %s657, 4
        %s659 = smul.addr %s658, 4
        %s660 = scalar_lea.vmem %s6, %s659
        %p661 = pneg %p218
        %p662 = pneg %p215
        %p663 = scmp.lt.s32.totalorder %s34, 1
        %s664 = scalar_select %p663, %s34, 1
        %s665 = scalar_lea.vmem %s7, %s664
        %p666 = pneg %p244
        %p667 = pneg %p241
        %p668 = scmp.lt.s32.totalorder %s34, 1
        %s669 = scalar_select %p668, %s34, 1
        %s670 = scalar_lea.vmem %s8, %s669
        %p671 = pneg %p270
        %p672 = pneg %p267
        %p673 = scmp.lt.s32.totalorder %s34, 1
        %s674 = scalar_select %p673, %s34, 1
        %s675 = scalar_lea.vmem %s9, %s674
        %p676 = pneg %p296
        %p677 = pneg %p293
        %p678 = scmp.lt.s32.totalorder %s34, 1
        %s679 = scalar_select %p678, %s34, 1
        %s680 = smul.addr %s679, 4
        %s681 = smul.addr %s680, 4
        %s682 = scalar_lea.vmem %s10, %s681
        %p683 = pneg %p322
        %p684 = pneg %p319
        %p685 = scmp.lt.s32.totalorder %s34, 1
        %s686 = scalar_select %p685, %s34, 1
        %s687 = scalar_lea.vmem %s11, %s686
        %p688 = pneg %p348
        %p689 = pneg %p345
        %p690 = scmp.lt.s32.totalorder %s34, 1
        %s691 = scalar_select %p690, %s34, 1
        %s692 = smul.addr %s691, 16
        %s693 = smul.addr %s692, 4
        %s694 = scalar_lea.vmem %s12, %s693
        %p695 = pneg %p374
        %p696 = pneg %p371
        %p697 = scmp.lt.s32.totalorder %s34, 1
        %s698 = scalar_select %p697, %s34, 1
        %s699 = scalar_lea.vmem %s13, %s698
        %p700 = pneg %p400
        %p701 = pneg %p397
        %p702 = pneg %p421
        %p703 = pneg %p418
        %p704 = pneg %p442
        %p705 = pneg %p439
        %p706 = pneg %p463
        %p707 = pneg %p460
        %p708 = pneg %p489
        %p709 = pneg %p486
        %s710 = smul.u32 2, %s33
        %p711 = scmp.lt.s32.totalorder %s710, 1
        %s712 = scalar_select %p711, %s710, 1
        %s713 = smul.addr %s712, 4
        %s714 = scalar_lea.vmem %s0, %s713
        %s715 = smul.u32 2, %s33
        %s716 = smul.u32 2, %s33
        %p717 = scmp.lt.s32.totalorder %s716, 1
        %s718 = scalar_select %p717, %s716, 1
        %s719 = scalar_lea.vmem %s1, %s718
        %s720 = smul.u32 2, %s33
        %p721 = scmp.lt.s32.totalorder %s34, 1
        %s722 = scalar_select %p721, %s34, 1
        %s723 = scalar_lea.vmem %s2, %s722
        %p724 = scmp.lt.s32.totalorder %s34, 1
        %s725 = scalar_select %p724, %s34, 1
        %s726 = scalar_lea.vmem %s3, %s725
        %p727 = scmp.lt.s32.totalorder %s34, 1
        %s728 = scalar_select %p727, %s34, 1
        %s729 = smul.addr %s728, 4
        %s730 = smul.addr %s729, 4
        %s731 = scalar_lea.vmem %s4, %s730
        %p732 = scmp.lt.s32.totalorder %s34, 1
        %s733 = scalar_select %p732, %s34, 1
        %s734 = scalar_lea.vmem %s5, %s733
        %p735 = scmp.lt.s32.totalorder %s34, 1
        %s736 = scalar_select %p735, %s34, 1
        %s737 = smul.addr %s736, 4
        %s738 = smul.addr %s737, 4
        %s739 = scalar_lea.vmem %s6, %s738
        %p740 = scmp.lt.s32.totalorder %s34, 1
        %s741 = scalar_select %p740, %s34, 1
        %s742 = scalar_lea.vmem %s7, %s741
        %p743 = scmp.lt.s32.totalorder %s34, 1
        %s744 = scalar_select %p743, %s34, 1
        %s745 = scalar_lea.vmem %s8, %s744
        %p746 = scmp.lt.s32.totalorder %s34, 1
        %s747 = scalar_select %p746, %s34, 1
        %s748 = scalar_lea.vmem %s9, %s747
        %p749 = scmp.lt.s32.totalorder %s34, 1
        %s750 = scalar_select %p749, %s34, 1
        %s751 = smul.addr %s750, 4
        %s752 = smul.addr %s751, 4
        %s753 = scalar_lea.vmem %s10, %s752
        %p754 = scmp.lt.s32.totalorder %s34, 1
        %s755 = scalar_select %p754, %s34, 1
        %s756 = scalar_lea.vmem %s11, %s755
        %p757 = scmp.lt.s32.totalorder %s34, 1
        %s758 = scalar_select %p757, %s34, 1
        %s759 = smul.addr %s758, 16
        %s760 = smul.addr %s759, 4
        %s761 = scalar_lea.vmem %s12, %s760
        %p762 = scmp.lt.s32.totalorder %s34, 1
        %s763 = scalar_select %p762, %s34, 1
        %s764 = scalar_lea.vmem %s13, %s763
        %s765 = smul.u32 2, %s33
        %p767 = scmp.eq.s32.totalorder %s34, 0
        // Predicated region
        $region89: #{tpu_custom_call.1} parent=87 // pred_check
          %p768 = pneg %p767
        $region90: #{tpu_custom_call.1} parent=87 // pred_check_branch
          %770 = sbr.rel (%p768) target = $region92
        $region91: #{tpu_custom_call.1} parent=87 // pred_region
          %v771 = vld [vmem:[%s714] sm:$0xf]
          %v772 = vld [vmem:[%s714 + $0x4] sm:$0xf]
          %v773 = vunpack.c.l.bf16 %v771
          %v774 = vunpack.c.l.bf16 %v772
          %vm775 = vcmask 261120
          %776 = vst.msk [vmem:[#allocation2] sm:$0xff] %vm775, %v773
          %777 = vst.msk [vmem:[#allocation2 + $0x8] sm:$0xff] %vm775, %v774
        $region92: #{tpu_custom_call.1} parent=87 // pred_fallthru
          _
        %v778 = vld [vmem:[#allocation2] sm:$0xff]
        %v779 = vld [vmem:[#allocation2 + $0x8] sm:$0xff]
        %v780 = vld [vmem:[%s723] sm:$0x1]
        %v781 = vld [vmem:[%s726] sm:$0x1]
        %vm782 = vcmask 261120
        %v783 = vsel %vm782, %v778, 0.0
        %784 = vadd.xlane.f32.xlu0 %v783
        %v785 = vpop.xlane.xlu0 %784
        %v786 = vsel %vm782, %v779, 0.0
        %787 = vadd.xlane.f32.xlu0 %v786
        %v788 = vpop.xlane.xlu0 %787
        %v789 = vrcp.pop 32.0
        %v790 = vmul.f32 32.0, %v789
        %v791 = vsub.f32 1.0, %v790
        %v792 = vmul.f32 %v789, %v791
        %v793 = vadd.f32 %v789, %v792
        %vm794 = vweird.f32 %v789
        %v795 = vsel %vm794, %v789, %v793
        %v796 = vmul.f32 %v785, %v795
        %v797 = vmul.f32 %v788, %v795
        %v798 = vsub.f32 %v778, %v796
        %v799 = vsub.f32 %v779, %v797
        %v800 = vmul.f32 %v798, %v798
        %v801 = vmul.f32 %v799, %v799
        %v802 = vsel %vm782, %v800, 0.0
        %803 = vadd.xlane.f32.xlu0 %v802
        %v804 = vpop.xlane.xlu0 %803
        %v805 = vsel %vm782, %v801, 0.0
        %806 = vadd.xlane.f32.xlu0 %v805
        %v807 = vpop.xlane.xlu0 %806
        %v808 = vmul.f32 %v804, %v795
        %v809 = vmul.f32 %v807, %v795
        %v810 = vadd.f32 %v808, 1e-05
        %v811 = vadd.f32 %v809, 1e-05
        %v812 = vrsqrt.pop %v810
        %v813 = vmul.f32 %v812, %v810
        %v814 = vmul.f32 %v813, %v812
        %v815 = vmul.f32 0.5, %v814
        %v816 = vsub.f32 1.5, %v815
        %v817 = vmul.f32 %v812, %v816
        %vm818 = vweird.f32 %v810
        %vm819 = vweird.f32 %v812
        %vm820 = vmor %vm818, %vm819
        %v821 = vsel %vm820, %v812, %v817
        %v822 = vrsqrt.pop %v811
        %v823 = vmul.f32 %v822, %v811
        %v824 = vmul.f32 %v823, %v822
        %v825 = vmul.f32 0.5, %v824
        %v826 = vsub.f32 1.5, %v825
        %v827 = vmul.f32 %v822, %v826
        %vm828 = vweird.f32 %v811
        %vm829 = vweird.f32 %v822
        %vm830 = vmor %vm828, %vm829
        %v831 = vsel %vm830, %v822, %v827
        %v832 = vmul.f32 %v798, %v821
        %v833 = vmul.f32 %v799, %v831
        %v835 = vperm.slane %v780, 0
        %v837 = vmul.f32 %v832, %v835
        %v838 = vmul.f32 %v833, %v835
        %v840 = vperm.slane %v781, 0
        %v842 = vadd.f32 %v837, %v840
        %v843 = vadd.f32 %v838, %v840
        %v844 = vpack.c.bf16 %v843, %v842
        %v845 = vld [vmem:[%s731] sm:$0xf]
        %v846 = vld [vmem:[%s731 + $0x4] sm:$0xf]
        %v847 = vld [vmem:[%s731 + $0x8] sm:$0xf]
        %v848 = vld [vmem:[%s731 + $0xc] sm:$0xf]
        %v849 = vld [vmem:[%s734] sm:$0x1]
        %v851 = vperm.slane %v849, 0
        %v857 = vunpack.c.l.b16 %v845
        %v858 = vunpack.c.l.b16 %v846
        %v859 = vunpack.c.l.b16 %v847
        %v860 = vunpack.c.l.b16 %v848
        %v861 = vpack.c.b16 %v858, %v857
        %v862 = vpack.c.b16 %v860, %v859
        %v866 = vsel %vm782, %v844, 0
        %868 = vmatpush.bf16.msra.mxu0 0
        %869 = vmatpush.bf16.msra.mxu0 0
        %870 = vmatpush.bf16.msra.mxu0 0
        %871 = vmatpush.bf16.msra.mxu0 0
        %872 = vmatpush.bf16.msra.mxu0 0
        %873 = vmatpush.bf16.msra.mxu0 0
        %874 = vmatpush.bf16.msra.mxu0 %v862
        %875 = vmatpush.bf16.msra.mxu0 %v861
        %876 = vmatmul.bf16.gmra.mxu0 %v866
        %v877 = vpop.f32.mrf.mxu0
        %v878 = vadd.f32 %v851, %v877
        %v879 = vpop.f32.mrf.mxu0
        %v880 = vadd.f32 %v851, %v879
        %881 = vdwg.mxu0
        %884 = vrot.lane.b32.xlu0 %v878, 120
        %v885 = vpop.permute.xlu0 %884
        %886 = vrot.lane.b32.xlu0 %v880, 120
        %v887 = vpop.permute.xlu0 %886
        %890 = vrot.lane.b32.xlu0 %v878, 112
        %v891 = vpop.permute.xlu0 %890
        %892 = vrot.lane.b32.xlu0 %v880, 112
        %v893 = vpop.permute.xlu0 %892
        %896 = vrot.lane.b32.xlu0 %v878, 104
        %v897 = vpop.permute.xlu0 %896
        %898 = vrot.lane.b32.xlu0 %v880, 104
        %v899 = vpop.permute.xlu0 %898
        %v902 = vrot.slane %v891, 4
        %vm903 = vcmask 1047556
        %v904 = vsel %vm903, %v902, %v878
        %v905 = vrot.slane %v878, 4
        %v906 = vsel %vm903, %v891, %v905
        %v908 = vunpack.c.l.s4 1983009808
        %v909 = vunpack.c.0.s8 %v908
        %v910 = vperm.slane %v904, %v909
        %v912 = vunpack.c.l.s4 1983009808
        %v913 = vunpack.c.0.s8 %v912
        %v914 = vperm.slane %v906, %v913
        %v915 = vrot.slane %v897, 4
        %v916 = vsel %vm903, %v915, %v885
        %v917 = vrot.slane %v885, 4
        %v918 = vsel %vm903, %v897, %v917
        %v920 = vunpack.c.l.s4 1983009808
        %v921 = vunpack.c.0.s8 %v920
        %v922 = vperm.slane %v916, %v921
        %v924 = vunpack.c.l.s4 1983009808
        %v925 = vunpack.c.0.s8 %v924
        %v926 = vperm.slane %v918, %v925
        %v927 = vrot.slane %v922, 4
        %v928 = vsel %vm903, %v927, %v910
        %v929 = vrot.slane %v910, 4
        %v930 = vsel %vm903, %v922, %v929
        %v932 = vunpack.c.l.s4 1934713408
        %v933 = vunpack.c.0.s8 %v932
        %v934 = vperm.slane %v928, %v933
        %v936 = vunpack.c.l.s4 1934713408
        %v937 = vunpack.c.0.s8 %v936
        %v938 = vperm.slane %v930, %v937
        %v939 = vrot.slane %v926, 4
        %v940 = vsel %vm903, %v939, %v914
        %v941 = vrot.slane %v914, 4
        %v942 = vsel %vm903, %v926, %v941
        %v944 = vunpack.c.l.s4 1934713408
        %v945 = vunpack.c.0.s8 %v944
        %v946 = vperm.slane %v940, %v945
        %v948 = vunpack.c.l.s4 1934713408
        %v949 = vunpack.c.0.s8 %v948
        %v950 = vperm.slane %v942, %v949
        %v951 = vrot.slane %v934, 4
        %v952 = vsel %vm903, 0.0, %v951
        %v953 = vrot.slane %v938, 4
        %v954 = vsel %vm903, 0.0, %v953
        %v955 = vrot.slane %v946, 4
        %v956 = vsel %vm903, 0.0, %v955
        %v957 = vrot.slane %v950, 4
        %v958 = vsel %vm903, 0.0, %v957
        %v959 = vrot.slane %v893, 4
        %v960 = vsel %vm903, %v959, %v880
        %v961 = vrot.slane %v880, 4
        %v962 = vsel %vm903, %v893, %v961
        %v964 = vunpack.c.l.s4 1983009808
        %v965 = vunpack.c.0.s8 %v964
        %v966 = vperm.slane %v960, %v965
        %v968 = vunpack.c.l.s4 1983009808
        %v969 = vunpack.c.0.s8 %v968
        %v970 = vperm.slane %v962, %v969
        %v971 = vrot.slane %v899, 4
        %v972 = vsel %vm903, %v971, %v887
        %v973 = vrot.slane %v887, 4
        %v974 = vsel %vm903, %v899, %v973
        %v976 = vunpack.c.l.s4 1983009808
        %v977 = vunpack.c.0.s8 %v976
        %v978 = vperm.slane %v972, %v977
        %v980 = vunpack.c.l.s4 1983009808
        %v981 = vunpack.c.0.s8 %v980
        %v982 = vperm.slane %v974, %v981
        %v983 = vrot.slane %v978, 4
        %v984 = vsel %vm903, %v983, %v966
        %v985 = vrot.slane %v966, 4
        %v986 = vsel %vm903, %v978, %v985
        %v988 = vunpack.c.l.s4 1934713408
        %v989 = vunpack.c.0.s8 %v988
        %v990 = vperm.slane %v984, %v989
        %v992 = vunpack.c.l.s4 1934713408
        %v993 = vunpack.c.0.s8 %v992
        %v994 = vperm.slane %v986, %v993
        %v995 = vrot.slane %v982, 4
        %v996 = vsel %vm903, %v995, %v970
        %v997 = vrot.slane %v970, 4
        %v998 = vsel %vm903, %v982, %v997
        %v1000 = vunpack.c.l.s4 1934713408
        %v1001 = vunpack.c.0.s8 %v1000
        %v1002 = vperm.slane %v996, %v1001
        %v1004 = vunpack.c.l.s4 1934713408
        %v1005 = vunpack.c.0.s8 %v1004
        %v1006 = vperm.slane %v998, %v1005
        %v1007 = vrot.slane %v990, 4
        %v1008 = vsel %vm903, 0.0, %v1007
        %v1009 = vrot.slane %v994, 4
        %v1010 = vsel %vm903, 0.0, %v1009
        %v1011 = vrot.slane %v1002, 4
        %v1012 = vsel %vm903, 0.0, %v1011
        %v1013 = vrot.slane %v1006, 4
        %v1014 = vsel %vm903, 0.0, %v1013
        %v1015 = vsel %vm903, %v953, %v934
        %v1017 = vunpack.c.l.s4 1983009808
        %v1018 = vunpack.c.0.s8 %v1017
        %v1019 = vperm.slane %v1015, %v1018
        %v1020 = vrot.slane %v954, 4
        %v1021 = vsel %vm903, %v1020, %v952
        %v1023 = vunpack.c.l.s4 1983009808
        %v1024 = vunpack.c.0.s8 %v1023
        %v1025 = vperm.slane %v1021, %v1024
        %v1026 = vsel %vm903, %v957, %v946
        %v1028 = vunpack.c.l.s4 1983009808
        %v1029 = vunpack.c.0.s8 %v1028
        %v1030 = vperm.slane %v1026, %v1029
        %v1031 = vrot.slane %v958, 4
        %v1032 = vsel %vm903, %v1031, %v956
        %v1034 = vunpack.c.l.s4 1983009808
        %v1035 = vunpack.c.0.s8 %v1034
        %v1036 = vperm.slane %v1032, %v1035
        %v1037 = vrot.slane %v1025, 4
        %v1038 = vsel %vm903, %v1037, %v1019
        %v1039 = vrot.slane %v1019, 4
        %v1040 = vsel %vm903, %v1025, %v1039
        %v1042 = vunpack.c.l.s4 1934713408
        %v1043 = vunpack.c.0.s8 %v1042
        %v1044 = vperm.slane %v1038, %v1043
        %v1046 = vunpack.c.l.s4 1934713408
        %v1047 = vunpack.c.0.s8 %v1046
        %v1048 = vperm.slane %v1040, %v1047
        %v1049 = vrot.slane %v1036, 4
        %v1050 = vsel %vm903, %v1049, %v1030
        %v1051 = vrot.slane %v1030, 4
        %v1052 = vsel %vm903, %v1036, %v1051
        %v1054 = vunpack.c.l.s4 1934713408
        %v1055 = vunpack.c.0.s8 %v1054
        %v1056 = vperm.slane %v1050, %v1055
        %v1058 = vunpack.c.l.s4 1934713408
        %v1059 = vunpack.c.0.s8 %v1058
        %v1060 = vperm.slane %v1052, %v1059
        %v1061 = vrot.slane %v1056, 4
        %v1062 = vsel %vm903, %v1061, %v1044
        %v1063 = vrot.slane %v1044, 4
        %v1064 = vsel %vm903, %v1056, %v1063
        %v1065 = vrot.slane %v1060, 4
        %v1066 = vsel %vm903, %v1065, %v1048
        %v1067 = vrot.slane %v1048, 4
        %v1068 = vsel %vm903, %v1060, %v1067
        %v1069 = vsel %vm903, %v1009, %v990
        %v1071 = vunpack.c.l.s4 1983009808
        %v1072 = vunpack.c.0.s8 %v1071
        %v1073 = vperm.slane %v1069, %v1072
        %v1074 = vrot.slane %v1010, 4
        %v1075 = vsel %vm903, %v1074, %v1008
        %v1077 = vunpack.c.l.s4 1983009808
        %v1078 = vunpack.c.0.s8 %v1077
        %v1079 = vperm.slane %v1075, %v1078
        %v1080 = vsel %vm903, %v1013, %v1002
        %v1082 = vunpack.c.l.s4 1983009808
        %v1083 = vunpack.c.0.s8 %v1082
        %v1084 = vperm.slane %v1080, %v1083
        %v1085 = vrot.slane %v1014, 4
        %v1086 = vsel %vm903, %v1085, %v1012
        %v1088 = vunpack.c.l.s4 1983009808
        %v1089 = vunpack.c.0.s8 %v1088
        %v1090 = vperm.slane %v1086, %v1089
        %v1091 = vrot.slane %v1079, 4
        %v1092 = vsel %vm903, %v1091, %v1073
        %v1093 = vrot.slane %v1073, 4
        %v1094 = vsel %vm903, %v1079, %v1093
        %v1096 = vunpack.c.l.s4 1934713408
        %v1097 = vunpack.c.0.s8 %v1096
        %v1098 = vperm.slane %v1092, %v1097
        %v1100 = vunpack.c.l.s4 1934713408
        %v1101 = vunpack.c.0.s8 %v1100
        %v1102 = vperm.slane %v1094, %v1101
        %v1103 = vrot.slane %v1090, 4
        %v1104 = vsel %vm903, %v1103, %v1084
        %v1105 = vrot.slane %v1084, 4
        %v1106 = vsel %vm903, %v1090, %v1105
        %v1108 = vunpack.c.l.s4 1934713408
        %v1109 = vunpack.c.0.s8 %v1108
        %v1110 = vperm.slane %v1104, %v1109
        %v1112 = vunpack.c.l.s4 1934713408
        %v1113 = vunpack.c.0.s8 %v1112
        %v1114 = vperm.slane %v1106, %v1113
        %v1115 = vrot.slane %v1110, 4
        %v1116 = vsel %vm903, %v1115, %v1098
        %v1117 = vrot.slane %v1098, 4
        %v1118 = vsel %vm903, %v1110, %v1117
        %v1119 = vrot.slane %v1114, 4
        %v1120 = vsel %vm903, %v1119, %v1102
        %v1121 = vrot.slane %v1102, 4
        %v1122 = vsel %vm903, %v1114, %v1121
        %v1123 = vmul.f32 %v1062, 0.35355338
        %v1124 = vmul.f32 %v1064, 0.35355338
        %v1125 = vmul.f32 %v1066, 0.35355338
        %v1126 = vmul.f32 %v1068, 0.35355338
        %v1127 = vmul.f32 %v1116, 0.35355338
        %v1128 = vmul.f32 %v1118, 0.35355338
        %v1129 = vmul.f32 %v1120, 0.35355338
        %v1130 = vmul.f32 %v1122, 0.35355338
        %1131 = vrot.lane.b32.xlu0 %v878, 96
        %v1132 = vpop.permute.xlu0 %1131
        %1133 = vrot.lane.b32.xlu0 %v880, 96
        %v1134 = vpop.permute.xlu0 %1133
        %1135 = vrot.lane.b32.xlu0 %v885, 96
        %v1136 = vpop.permute.xlu0 %1135
        %1137 = vrot.lane.b32.xlu0 %v887, 96
        %v1138 = vpop.permute.xlu0 %1137
        %1139 = vrot.lane.b32.xlu0 %v891, 96
        %v1140 = vpop.permute.xlu0 %1139
        %1141 = vrot.lane.b32.xlu0 %v893, 96
        %v1142 = vpop.permute.xlu0 %1141
        %1143 = vrot.lane.b32.xlu0 %v897, 96
        %v1144 = vpop.permute.xlu0 %1143
        %1145 = vrot.lane.b32.xlu0 %v899, 96
        %v1146 = vpop.permute.xlu0 %1145
        %v1155 = vrot.slane %v1140, 4
        %v1156 = vsel %vm903, %v1155, %v1132
        %v1157 = vrot.slane %v1132, 4
        %v1158 = vsel %vm903, %v1140, %v1157
        %v1160 = vunpack.c.l.s4 1983009808
        %v1161 = vunpack.c.0.s8 %v1160
        %v1162 = vperm.slane %v1156, %v1161
        %v1164 = vunpack.c.l.s4 1983009808
        %v1165 = vunpack.c.0.s8 %v1164
        %v1166 = vperm.slane %v1158, %v1165
        %v1167 = vrot.slane %v1144, 4
        %v1168 = vsel %vm903, %v1167, %v1136
        %v1169 = vrot.slane %v1136, 4
        %v1170 = vsel %vm903, %v1144, %v1169
        %v1172 = vunpack.c.l.s4 1983009808
        %v1173 = vunpack.c.0.s8 %v1172
        %v1174 = vperm.slane %v1168, %v1173
        %v1176 = vunpack.c.l.s4 1983009808
        %v1177 = vunpack.c.0.s8 %v1176
        %v1178 = vperm.slane %v1170, %v1177
        %v1179 = vrot.slane %v1174, 4
        %v1180 = vsel %vm903, %v1179, %v1162
        %v1181 = vrot.slane %v1162, 4
        %v1182 = vsel %vm903, %v1174, %v1181
        %v1184 = vunpack.c.l.s4 1934713408
        %v1185 = vunpack.c.0.s8 %v1184
        %v1186 = vperm.slane %v1180, %v1185
        %v1188 = vunpack.c.l.s4 1934713408
        %v1189 = vunpack.c.0.s8 %v1188
        %v1190 = vperm.slane %v1182, %v1189
        %v1191 = vrot.slane %v1178, 4
        %v1192 = vsel %vm903, %v1191, %v1166
        %v1193 = vrot.slane %v1166, 4
        %v1194 = vsel %vm903, %v1178, %v1193
        %v1196 = vunpack.c.l.s4 1934713408
        %v1197 = vunpack.c.0.s8 %v1196
        %v1198 = vperm.slane %v1192, %v1197
        %v1200 = vunpack.c.l.s4 1934713408
        %v1201 = vunpack.c.0.s8 %v1200
        %v1202 = vperm.slane %v1194, %v1201
        %v1203 = vrot.slane %v1186, 4
        %v1204 = vsel %vm903, 0.0, %v1203
        %v1205 = vrot.slane %v1190, 4
        %v1206 = vsel %vm903, 0.0, %v1205
        %v1207 = vrot.slane %v1198, 4
        %v1208 = vsel %vm903, 0.0, %v1207
        %v1209 = vrot.slane %v1202, 4
        %v1210 = vsel %vm903, 0.0, %v1209
        %v1211 = vrot.slane %v1142, 4
        %v1212 = vsel %vm903, %v1211, %v1134
        %v1213 = vrot.slane %v1134, 4
        %v1214 = vsel %vm903, %v1142, %v1213
        %v1216 = vunpack.c.l.s4 1983009808
        %v1217 = vunpack.c.0.s8 %v1216
        %v1218 = vperm.slane %v1212, %v1217
        %v1220 = vunpack.c.l.s4 1983009808
        %v1221 = vunpack.c.0.s8 %v1220
        %v1222 = vperm.slane %v1214, %v1221
        %v1223 = vrot.slane %v1146, 4
        %v1224 = vsel %vm903, %v1223, %v1138
        %v1225 = vrot.slane %v1138, 4
        %v1226 = vsel %vm903, %v1146, %v1225
        %v1228 = vunpack.c.l.s4 1983009808
        %v1229 = vunpack.c.0.s8 %v1228
        %v1230 = vperm.slane %v1224, %v1229
        %v1232 = vunpack.c.l.s4 1983009808
        %v1233 = vunpack.c.0.s8 %v1232
        %v1234 = vperm.slane %v1226, %v1233
        %v1235 = vrot.slane %v1230, 4
        %v1236 = vsel %vm903, %v1235, %v1218
        %v1237 = vrot.slane %v1218, 4
        %v1238 = vsel %vm903, %v1230, %v1237
        %v1240 = vunpack.c.l.s4 1934713408
        %v1241 = vunpack.c.0.s8 %v1240
        %v1242 = vperm.slane %v1236, %v1241
        %v1244 = vunpack.c.l.s4 1934713408
        %v1245 = vunpack.c.0.s8 %v1244
        %v1246 = vperm.slane %v1238, %v1245
        %v1247 = vrot.slane %v1234, 4
        %v1248 = vsel %vm903, %v1247, %v1222
        %v1249 = vrot.slane %v1222, 4
        %v1250 = vsel %vm903, %v1234, %v1249
        %v1252 = vunpack.c.l.s4 1934713408
        %v1253 = vunpack.c.0.s8 %v1252
        %v1254 = vperm.slane %v1248, %v1253
        %v1256 = vunpack.c.l.s4 1934713408
        %v1257 = vunpack.c.0.s8 %v1256
        %v1258 = vperm.slane %v1250, %v1257
        %v1259 = vrot.slane %v1242, 4
        %v1260 = vsel %vm903, 0.0, %v1259
        %v1261 = vrot.slane %v1246, 4
        %v1262 = vsel %vm903, 0.0, %v1261
        %v1263 = vrot.slane %v1254, 4
        %v1264 = vsel %vm903, 0.0, %v1263
        %v1265 = vrot.slane %v1258, 4
        %v1266 = vsel %vm903, 0.0, %v1265
        %v1267 = vsel %vm903, %v1205, %v1186
        %v1269 = vunpack.c.l.s4 1983009808
        %v1270 = vunpack.c.0.s8 %v1269
        %v1271 = vperm.slane %v1267, %v1270
        %v1272 = vrot.slane %v1206, 4
        %v1273 = vsel %vm903, %v1272, %v1204
        %v1275 = vunpack.c.l.s4 1983009808
        %v1276 = vunpack.c.0.s8 %v1275
        %v1277 = vperm.slane %v1273, %v1276
        %v1278 = vsel %vm903, %v1209, %v1198
        %v1280 = vunpack.c.l.s4 1983009808
        %v1281 = vunpack.c.0.s8 %v1280
        %v1282 = vperm.slane %v1278, %v1281
        %v1283 = vrot.slane %v1210, 4
        %v1284 = vsel %vm903, %v1283, %v1208
        %v1286 = vunpack.c.l.s4 1983009808
        %v1287 = vunpack.c.0.s8 %v1286
        %v1288 = vperm.slane %v1284, %v1287
        %v1289 = vrot.slane %v1277, 4
        %v1290 = vsel %vm903, %v1289, %v1271
        %v1291 = vrot.slane %v1271, 4
        %v1292 = vsel %vm903, %v1277, %v1291
        %v1294 = vunpack.c.l.s4 1934713408
        %v1295 = vunpack.c.0.s8 %v1294
        %v1296 = vperm.slane %v1290, %v1295
        %v1298 = vunpack.c.l.s4 1934713408
        %v1299 = vunpack.c.0.s8 %v1298
        %v1300 = vperm.slane %v1292, %v1299
        %v1301 = vrot.slane %v1288, 4
        %v1302 = vsel %vm903, %v1301, %v1282
        %v1303 = vrot.slane %v1282, 4
        %v1304 = vsel %vm903, %v1288, %v1303
        %v1306 = vunpack.c.l.s4 1934713408
        %v1307 = vunpack.c.0.s8 %v1306
        %v1308 = vperm.slane %v1302, %v1307
        %v1310 = vunpack.c.l.s4 1934713408
        %v1311 = vunpack.c.0.s8 %v1310
        %v1312 = vperm.slane %v1304, %v1311
        %v1313 = vrot.slane %v1308, 4
        %v1314 = vsel %vm903, %v1313, %v1296
        %v1315 = vrot.slane %v1296, 4
        %v1316 = vsel %vm903, %v1308, %v1315
        %v1317 = vrot.slane %v1312, 4
        %v1318 = vsel %vm903, %v1317, %v1300
        %v1319 = vrot.slane %v1300, 4
        %v1320 = vsel %vm903, %v1312, %v1319
        %v1321 = vsel %vm903, %v1261, %v1242
        %v1323 = vunpack.c.l.s4 1983009808
        %v1324 = vunpack.c.0.s8 %v1323
        %v1325 = vperm.slane %v1321, %v1324
        %v1326 = vrot.slane %v1262, 4
        %v1327 = vsel %vm903, %v1326, %v1260
        %v1329 = vunpack.c.l.s4 1983009808
        %v1330 = vunpack.c.0.s8 %v1329
        %v1331 = vperm.slane %v1327, %v1330
        %v1332 = vsel %vm903, %v1265, %v1254
        %v1334 = vunpack.c.l.s4 1983009808
        %v1335 = vunpack.c.0.s8 %v1334
        %v1336 = vperm.slane %v1332, %v1335
        %v1337 = vrot.slane %v1266, 4
        %v1338 = vsel %vm903, %v1337, %v1264
        %v1340 = vunpack.c.l.s4 1983009808
        %v1341 = vunpack.c.0.s8 %v1340
        %v1342 = vperm.slane %v1338, %v1341
        %v1343 = vrot.slane %v1331, 4
        %v1344 = vsel %vm903, %v1343, %v1325
        %v1345 = vrot.slane %v1325, 4
        %v1346 = vsel %vm903, %v1331, %v1345
        %v1348 = vunpack.c.l.s4 1934713408
        %v1349 = vunpack.c.0.s8 %v1348
        %v1350 = vperm.slane %v1344, %v1349
        %v1352 = vunpack.c.l.s4 1934713408
        %v1353 = vunpack.c.0.s8 %v1352
        %v1354 = vperm.slane %v1346, %v1353
        %v1355 = vrot.slane %v1342, 4
        %v1356 = vsel %vm903, %v1355, %v1336
        %v1357 = vrot.slane %v1336, 4
        %v1358 = vsel %vm903, %v1342, %v1357
        %v1360 = vunpack.c.l.s4 1934713408
        %v1361 = vunpack.c.0.s8 %v1360
        %v1362 = vperm.slane %v1356, %v1361
        %v1364 = vunpack.c.l.s4 1934713408
        %v1365 = vunpack.c.0.s8 %v1364
        %v1366 = vperm.slane %v1358, %v1365
        %v1367 = vrot.slane %v1362, 4
        %v1368 = vsel %vm903, %v1367, %v1350
        %v1369 = vrot.slane %v1350, 4
        %v1370 = vsel %vm903, %v1362, %v1369
        %v1371 = vrot.slane %v1366, 4
        %v1372 = vsel %vm903, %v1371, %v1354
        %v1373 = vrot.slane %v1354, 4
        %v1374 = vsel %vm903, %v1366, %v1373
        %1375 = vrot.lane.b32.xlu0 %v878, 64
        %v1376 = vpop.permute.xlu0 %1375
        %1377 = vrot.lane.b32.xlu0 %v880, 64
        %v1378 = vpop.permute.xlu0 %1377
        %1379 = vrot.lane.b32.xlu0 %v885, 64
        %v1380 = vpop.permute.xlu0 %1379
        %1381 = vrot.lane.b32.xlu0 %v887, 64
        %v1382 = vpop.permute.xlu0 %1381
        %1383 = vrot.lane.b32.xlu0 %v891, 64
        %v1384 = vpop.permute.xlu0 %1383
        %1385 = vrot.lane.b32.xlu0 %v893, 64
        %v1386 = vpop.permute.xlu0 %1385
        %1387 = vrot.lane.b32.xlu0 %v897, 64
        %v1388 = vpop.permute.xlu0 %1387
        %1389 = vrot.lane.b32.xlu0 %v899, 64
        %v1390 = vpop.permute.xlu0 %1389
        %v1399 = vrot.slane %v1384, 4
        %v1400 = vsel %vm903, %v1399, %v1376
        %v1401 = vrot.slane %v1376, 4
        %v1402 = vsel %vm903, %v1384, %v1401
        %v1404 = vunpack.c.l.s4 1983009808
        %v1405 = vunpack.c.0.s8 %v1404
        %v1406 = vperm.slane %v1400, %v1405
        %v1408 = vunpack.c.l.s4 1983009808
        %v1409 = vunpack.c.0.s8 %v1408
        %v1410 = vperm.slane %v1402, %v1409
        %v1411 = vrot.slane %v1388, 4
        %v1412 = vsel %vm903, %v1411, %v1380
        %v1413 = vrot.slane %v1380, 4
        %v1414 = vsel %vm903, %v1388, %v1413
        %v1416 = vunpack.c.l.s4 1983009808
        %v1417 = vunpack.c.0.s8 %v1416
        %v1418 = vperm.slane %v1412, %v1417
        %v1420 = vunpack.c.l.s4 1983009808
        %v1421 = vunpack.c.0.s8 %v1420
        %v1422 = vperm.slane %v1414, %v1421
        %v1423 = vrot.slane %v1418, 4
        %v1424 = vsel %vm903, %v1423, %v1406
        %v1425 = vrot.slane %v1406, 4
        %v1426 = vsel %vm903, %v1418, %v1425
        %v1428 = vunpack.c.l.s4 1934713408
        %v1429 = vunpack.c.0.s8 %v1428
        %v1430 = vperm.slane %v1424, %v1429
        %v1432 = vunpack.c.l.s4 1934713408
        %v1433 = vunpack.c.0.s8 %v1432
        %v1434 = vperm.slane %v1426, %v1433
        %v1435 = vrot.slane %v1422, 4
        %v1436 = vsel %vm903, %v1435, %v1410
        %v1437 = vrot.slane %v1410, 4
        %v1438 = vsel %vm903, %v1422, %v1437
        %v1440 = vunpack.c.l.s4 1934713408
        %v1441 = vunpack.c.0.s8 %v1440
        %v1442 = vperm.slane %v1436, %v1441
        %v1444 = vunpack.c.l.s4 1934713408
        %v1445 = vunpack.c.0.s8 %v1444
        %v1446 = vperm.slane %v1438, %v1445
        %v1447 = vrot.slane %v1430, 4
        %v1448 = vsel %vm903, 0.0, %v1447
        %v1449 = vrot.slane %v1434, 4
        %v1450 = vsel %vm903, 0.0, %v1449
        %v1451 = vrot.slane %v1442, 4
        %v1452 = vsel %vm903, 0.0, %v1451
        %v1453 = vrot.slane %v1446, 4
        %v1454 = vsel %vm903, 0.0, %v1453
        %v1455 = vrot.slane %v1386, 4
        %v1456 = vsel %vm903, %v1455, %v1378
        %v1457 = vrot.slane %v1378, 4
        %v1458 = vsel %vm903, %v1386, %v1457
        %v1460 = vunpack.c.l.s4 1983009808
        %v1461 = vunpack.c.0.s8 %v1460
        %v1462 = vperm.slane %v1456, %v1461
        %v1464 = vunpack.c.l.s4 1983009808
        %v1465 = vunpack.c.0.s8 %v1464
        %v1466 = vperm.slane %v1458, %v1465
        %v1467 = vrot.slane %v1390, 4
        %v1468 = vsel %vm903, %v1467, %v1382
        %v1469 = vrot.slane %v1382, 4
        %v1470 = vsel %vm903, %v1390, %v1469
        %v1472 = vunpack.c.l.s4 1983009808
        %v1473 = vunpack.c.0.s8 %v1472
        %v1474 = vperm.slane %v1468, %v1473
        %v1476 = vunpack.c.l.s4 1983009808
        %v1477 = vunpack.c.0.s8 %v1476
        %v1478 = vperm.slane %v1470, %v1477
        %v1479 = vrot.slane %v1474, 4
        %v1480 = vsel %vm903, %v1479, %v1462
        %v1481 = vrot.slane %v1462, 4
        %v1482 = vsel %vm903, %v1474, %v1481
        %v1484 = vunpack.c.l.s4 1934713408
        %v1485 = vunpack.c.0.s8 %v1484
        %v1486 = vperm.slane %v1480, %v1485
        %v1488 = vunpack.c.l.s4 1934713408
        %v1489 = vunpack.c.0.s8 %v1488
        %v1490 = vperm.slane %v1482, %v1489
        %v1491 = vrot.slane %v1478, 4
        %v1492 = vsel %vm903, %v1491, %v1466
        %v1493 = vrot.slane %v1466, 4
        %v1494 = vsel %vm903, %v1478, %v1493
        %v1496 = vunpack.c.l.s4 1934713408
        %v1497 = vunpack.c.0.s8 %v1496
        %v1498 = vperm.slane %v1492, %v1497
        %v1500 = vunpack.c.l.s4 1934713408
        %v1501 = vunpack.c.0.s8 %v1500
        %v1502 = vperm.slane %v1494, %v1501
        %v1503 = vrot.slane %v1486, 4
        %v1504 = vsel %vm903, 0.0, %v1503
        %v1505 = vrot.slane %v1490, 4
        %v1506 = vsel %vm903, 0.0, %v1505
        %v1507 = vrot.slane %v1498, 4
        %v1508 = vsel %vm903, 0.0, %v1507
        %v1509 = vrot.slane %v1502, 4
        %v1510 = vsel %vm903, 0.0, %v1509
        %v1511 = vsel %vm903, %v1449, %v1430
        %v1513 = vunpack.c.l.s4 1983009808
        %v1514 = vunpack.c.0.s8 %v1513
        %v1515 = vperm.slane %v1511, %v1514
        %v1516 = vrot.slane %v1450, 4
        %v1517 = vsel %vm903, %v1516, %v1448
        %v1519 = vunpack.c.l.s4 1983009808
        %v1520 = vunpack.c.0.s8 %v1519
        %v1521 = vperm.slane %v1517, %v1520
        %v1522 = vsel %vm903, %v1453, %v1442
        %v1524 = vunpack.c.l.s4 1983009808
        %v1525 = vunpack.c.0.s8 %v1524
        %v1526 = vperm.slane %v1522, %v1525
        %v1527 = vrot.slane %v1454, 4
        %v1528 = vsel %vm903, %v1527, %v1452
        %v1530 = vunpack.c.l.s4 1983009808
        %v1531 = vunpack.c.0.s8 %v1530
        %v1532 = vperm.slane %v1528, %v1531
        %v1533 = vrot.slane %v1521, 4
        %v1534 = vsel %vm903, %v1533, %v1515
        %v1535 = vrot.slane %v1515, 4
        %v1536 = vsel %vm903, %v1521, %v1535
        %v1538 = vunpack.c.l.s4 1934713408
        %v1539 = vunpack.c.0.s8 %v1538
        %v1540 = vperm.slane %v1534, %v1539
        %v1542 = vunpack.c.l.s4 1934713408
        %v1543 = vunpack.c.0.s8 %v1542
        %v1544 = vperm.slane %v1536, %v1543
        %v1545 = vrot.slane %v1532, 4
        %v1546 = vsel %vm903, %v1545, %v1526
        %v1547 = vrot.slane %v1526, 4
        %v1548 = vsel %vm903, %v1532, %v1547
        %v1550 = vunpack.c.l.s4 1934713408
        %v1551 = vunpack.c.0.s8 %v1550
        %v1552 = vperm.slane %v1546, %v1551
        %v1554 = vunpack.c.l.s4 1934713408
        %v1555 = vunpack.c.0.s8 %v1554
        %v1556 = vperm.slane %v1548, %v1555
        %v1557 = vrot.slane %v1552, 4
        %v1558 = vsel %vm903, %v1557, %v1540
        %v1559 = vrot.slane %v1540, 4
        %v1560 = vsel %vm903, %v1552, %v1559
        %v1561 = vrot.slane %v1556, 4
        %v1562 = vsel %vm903, %v1561, %v1544
        %v1563 = vrot.slane %v1544, 4
        %v1564 = vsel %vm903, %v1556, %v1563
        %v1565 = vsel %vm903, %v1505, %v1486
        %v1567 = vunpack.c.l.s4 1983009808
        %v1568 = vunpack.c.0.s8 %v1567
        %v1569 = vperm.slane %v1565, %v1568
        %v1570 = vrot.slane %v1506, 4
        %v1571 = vsel %vm903, %v1570, %v1504
        %v1573 = vunpack.c.l.s4 1983009808
        %v1574 = vunpack.c.0.s8 %v1573
        %v1575 = vperm.slane %v1571, %v1574
        %v1576 = vsel %vm903, %v1509, %v1498
        %v1578 = vunpack.c.l.s4 1983009808
        %v1579 = vunpack.c.0.s8 %v1578
        %v1580 = vperm.slane %v1576, %v1579
        %v1581 = vrot.slane %v1510, 4
        %v1582 = vsel %vm903, %v1581, %v1508
        %v1584 = vunpack.c.l.s4 1983009808
        %v1585 = vunpack.c.0.s8 %v1584
        %v1586 = vperm.slane %v1582, %v1585
        %v1587 = vrot.slane %v1575, 4
        %v1588 = vsel %vm903, %v1587, %v1569
        %v1589 = vrot.slane %v1569, 4
        %v1590 = vsel %vm903, %v1575, %v1589
        %v1592 = vunpack.c.l.s4 1934713408
        %v1593 = vunpack.c.0.s8 %v1592
        %v1594 = vperm.slane %v1588, %v1593
        %v1596 = vunpack.c.l.s4 1934713408
        %v1597 = vunpack.c.0.s8 %v1596
        %v1598 = vperm.slane %v1590, %v1597
        %v1599 = vrot.slane %v1586, 4
        %v1600 = vsel %vm903, %v1599, %v1580
        %v1601 = vrot.slane %v1580, 4
        %v1602 = vsel %vm903, %v1586, %v1601
        %v1604 = vunpack.c.l.s4 1934713408
        %v1605 = vunpack.c.0.s8 %v1604
        %v1606 = vperm.slane %v1600, %v1605
        %v1608 = vunpack.c.l.s4 1934713408
        %v1609 = vunpack.c.0.s8 %v1608
        %v1610 = vperm.slane %v1602, %v1609
        %v1611 = vrot.slane %v1606, 4
        %v1612 = vsel %vm903, %v1611, %v1594
        %v1613 = vrot.slane %v1594, 4
        %v1614 = vsel %vm903, %v1606, %v1613
        %v1615 = vrot.slane %v1610, 4
        %v1616 = vsel %vm903, %v1615, %v1598
        %v1617 = vrot.slane %v1598, 4
        %v1618 = vsel %vm903, %v1610, %v1617
        %v1619 = vpack.c.bf16 %v1123, %v1123
        %v1620 = vpack.c.bf16 %v1124, %v1124
        %v1621 = vpack.c.bf16 %v1125, %v1125
        %v1622 = vpack.c.bf16 %v1126, %v1126
        %v1623 = vpack.c.bf16 %v1127, %v1127
        %v1624 = vpack.c.bf16 %v1128, %v1128
        %v1625 = vpack.c.bf16 %v1129, %v1129
        %v1626 = vpack.c.bf16 %v1130, %v1130
        %v1627 = vpack.c.bf16 %v1314, %v1314
        %v1628 = vpack.c.bf16 %v1316, %v1316
        %v1629 = vpack.c.bf16 %v1318, %v1318
        %v1630 = vpack.c.bf16 %v1320, %v1320
        %v1631 = vpack.c.bf16 %v1368, %v1368
        %v1632 = vpack.c.bf16 %v1370, %v1370
        %v1633 = vpack.c.bf16 %v1372, %v1372
        %v1634 = vpack.c.bf16 %v1374, %v1374
        %vm1635 = vcmask 64512
        %v1637 = vsel %vm1635, %v1619, 0
        %v1640 = vsel %vm1635, %v1627, 0
        %1642 = vmatpush.bf16.xpose.msra.mxu0 0
        %1643 = vmatpush.bf16.xpose.msra.mxu0 0
        %1644 = vmatpush.bf16.xpose.msra.mxu0 0
        %1645 = vmatpush.bf16.xpose.msra.mxu0 0
        %1646 = vmatpush.bf16.xpose.msra.mxu0 0
        %1647 = vmatpush.bf16.xpose.msra.mxu0 0
        %1648 = vmatpush.bf16.xpose.msra.mxu0 0
        %1649 = vmatpush.bf16.xpose.msra.mxu0 %v1640
        %1650 = vmatmul.bf16.gmra.mxu0 %v1637
        %v1651 = vpop.f32.mrf.mxu0
        %v1652 = vadd.f32 0.0, %v1651
        %v1653 = vpop.f32.mrf.mxu0
        %1654 = vdwg.mxu0
        %v1656 = vsel %vm1635, %v1620, 0
        %v1659 = vsel %vm1635, %v1628, 0
        %1661 = vmatpush.bf16.xpose.msra.mxu0 0
        %1662 = vmatpush.bf16.xpose.msra.mxu0 0
        %1663 = vmatpush.bf16.xpose.msra.mxu0 0
        %1664 = vmatpush.bf16.xpose.msra.mxu0 0
        %1665 = vmatpush.bf16.xpose.msra.mxu0 0
        %1666 = vmatpush.bf16.xpose.msra.mxu0 0
        %1667 = vmatpush.bf16.xpose.msra.mxu0 0
        %1668 = vmatpush.bf16.xpose.msra.mxu0 %v1659
        %1669 = vmatmul.bf16.gmra.mxu0 %v1656
        %v1670 = vpop.f32.mrf.mxu0
        %v1671 = vadd.f32 0.0, %v1670
        %v1672 = vpop.f32.mrf.mxu0
        %1673 = vdwg.mxu0
        %v1675 = vsel %vm1635, %v1621, 0
        %v1678 = vsel %vm1635, %v1629, 0
        %1680 = vmatpush.bf16.xpose.msra.mxu0 0
        %1681 = vmatpush.bf16.xpose.msra.mxu0 0
        %1682 = vmatpush.bf16.xpose.msra.mxu0 0
        %1683 = vmatpush.bf16.xpose.msra.mxu0 0
        %1684 = vmatpush.bf16.xpose.msra.mxu0 0
        %1685 = vmatpush.bf16.xpose.msra.mxu0 0
        %1686 = vmatpush.bf16.xpose.msra.mxu0 0
        %1687 = vmatpush.bf16.xpose.msra.mxu0 %v1678
        %1688 = vmatmul.bf16.gmra.mxu0 %v1675
        %v1689 = vpop.f32.mrf.mxu0
        %v1690 = vadd.f32 0.0, %v1689
        %v1691 = vpop.f32.mrf.mxu0
        %1692 = vdwg.mxu0
        %v1694 = vsel %vm1635, %v1622, 0
        %v1697 = vsel %vm1635, %v1630, 0
        %1699 = vmatpush.bf16.xpose.msra.mxu0 0
        %1700 = vmatpush.bf16.xpose.msra.mxu0 0
        %1701 = vmatpush.bf16.xpose.msra.mxu0 0
        %1702 = vmatpush.bf16.xpose.msra.mxu0 0
        %1703 = vmatpush.bf16.xpose.msra.mxu0 0
        %1704 = vmatpush.bf16.xpose.msra.mxu0 0
        %1705 = vmatpush.bf16.xpose.msra.mxu0 0
        %1706 = vmatpush.bf16.xpose.msra.mxu0 %v1697
        %1707 = vmatmul.bf16.gmra.mxu0 %v1694
        %v1708 = vpop.f32.mrf.mxu0
        %v1709 = vadd.f32 0.0, %v1708
        %v1710 = vpop.f32.mrf.mxu0
        %1711 = vdwg.mxu0
        %v1713 = vsel %vm1635, %v1623, 0
        %v1716 = vsel %vm1635, %v1631, 0
        %1718 = vmatpush.bf16.xpose.msra.mxu0 0
        %1719 = vmatpush.bf16.xpose.msra.mxu0 0
        %1720 = vmatpush.bf16.xpose.msra.mxu0 0
        %1721 = vmatpush.bf16.xpose.msra.mxu0 0
        %1722 = vmatpush.bf16.xpose.msra.mxu0 0
        %1723 = vmatpush.bf16.xpose.msra.mxu0 0
        %1724 = vmatpush.bf16.xpose.msra.mxu0 0
        %1725 = vmatpush.bf16.xpose.msra.mxu0 %v1716
        %1726 = vmatmul.bf16.gmra.mxu0 %v1713
        %v1727 = vpop.f32.mrf.mxu0
        %v1728 = vadd.f32 0.0, %v1727
        %v1729 = vpop.f32.mrf.mxu0
        %1730 = vdwg.mxu0
        %v1732 = vsel %vm1635, %v1624, 0
        %v1735 = vsel %vm1635, %v1632, 0
        %1737 = vmatpush.bf16.xpose.msra.mxu0 0
        %1738 = vmatpush.bf16.xpose.msra.mxu0 0
        %1739 = vmatpush.bf16.xpose.msra.mxu0 0
        %1740 = vmatpush.bf16.xpose.msra.mxu0 0
        %1741 = vmatpush.bf16.xpose.msra.mxu0 0
        %1742 = vmatpush.bf16.xpose.msra.mxu0 0
        %1743 = vmatpush.bf16.xpose.msra.mxu0 0
        %1744 = vmatpush.bf16.xpose.msra.mxu0 %v1735
        %1745 = vmatmul.bf16.gmra.mxu0 %v1732
        %v1746 = vpop.f32.mrf.mxu0
        %v1747 = vadd.f32 0.0, %v1746
        %v1748 = vpop.f32.mrf.mxu0
        %1749 = vdwg.mxu0
        %v1751 = vsel %vm1635, %v1625, 0
        %v1754 = vsel %vm1635, %v1633, 0
        %1756 = vmatpush.bf16.xpose.msra.mxu0 0
        %1757 = vmatpush.bf16.xpose.msra.mxu0 0
        %1758 = vmatpush.bf16.xpose.msra.mxu0 0
        %1759 = vmatpush.bf16.xpose.msra.mxu0 0
        %1760 = vmatpush.bf16.xpose.msra.mxu0 0
        %1761 = vmatpush.bf16.xpose.msra.mxu0 0
        %1762 = vmatpush.bf16.xpose.msra.mxu0 0
        %1763 = vmatpush.bf16.xpose.msra.mxu0 %v1754
        %1764 = vmatmul.bf16.gmra.mxu0 %v1751
        %v1765 = vpop.f32.mrf.mxu0
        %v1766 = vadd.f32 0.0, %v1765
        %v1767 = vpop.f32.mrf.mxu0
        %1768 = vdwg.mxu0
        %v1770 = vsel %vm1635, %v1626, 0
        %v1773 = vsel %vm1635, %v1634, 0
        %1775 = vmatpush.bf16.xpose.msra.mxu0 0
        %1776 = vmatpush.bf16.xpose.msra.mxu0 0
        %1777 = vmatpush.bf16.xpose.msra.mxu0 0
        %1778 = vmatpush.bf16.xpose.msra.mxu0 0
        %1779 = vmatpush.bf16.xpose.msra.mxu0 0
        %1780 = vmatpush.bf16.xpose.msra.mxu0 0
        %1781 = vmatpush.bf16.xpose.msra.mxu0 0
        %1782 = vmatpush.bf16.xpose.msra.mxu0 %v1773
        %1783 = vmatmul.bf16.gmra.mxu0 %v1770
        %v1784 = vpop.f32.mrf.mxu0
        %v1785 = vadd.f32 0.0, %v1784
        %v1786 = vpop.f32.mrf.mxu0
        %1787 = vdwg.mxu0
        %v1788 = vlaneseq
        %v1789 = vshrl.u32 %v1788, 7
        %v1790 = vlaneseq
        %v1791 = vand.u32 %v1790, 127
        %vm1792 = vcmp.le.s32.totalorder %v1791, %v1789
        %v1793 = vsel %vm1792, 1, 0
        %vm1794 = vcmp.eq.s32.totalorder %v1793, 1
        %v1795 = vsel %vm1794, %v1652, -1e+30
        %v1796 = vsel %vm1794, %v1671, -1e+30
        %v1797 = vsel %vm1794, %v1690, -1e+30
        %v1798 = vsel %vm1794, %v1709, -1e+30
        %v1799 = vsel %vm1794, %v1728, -1e+30
        %v1800 = vsel %vm1794, %v1747, -1e+30
        %v1801 = vsel %vm1794, %v1766, -1e+30
        %v1802 = vsel %vm1794, %v1785, -1e+30
        %v1803 = vsel %vm1635, %v1795, -inf
        %1804 = vmax.xlane.f32.xlu0 %v1803
        %v1805 = vpop.xlane.xlu0 %1804
        %v1806 = vsel %vm1635, %v1796, -inf
        %1807 = vmax.xlane.f32.xlu0 %v1806
        %v1808 = vpop.xlane.xlu0 %1807
        %v1809 = vsel %vm1635, %v1797, -inf
        %1810 = vmax.xlane.f32.xlu0 %v1809
        %v1811 = vpop.xlane.xlu0 %1810
        %v1812 = vsel %vm1635, %v1798, -inf
        %1813 = vmax.xlane.f32.xlu0 %v1812
        %v1814 = vpop.xlane.xlu0 %1813
        %v1815 = vsel %vm1635, %v1799, -inf
        %1816 = vmax.xlane.f32.xlu0 %v1815
        %v1817 = vpop.xlane.xlu0 %1816
        %v1818 = vsel %vm1635, %v1800, -inf
        %1819 = vmax.xlane.f32.xlu0 %v1818
        %v1820 = vpop.xlane.xlu0 %1819
        %v1821 = vsel %vm1635, %v1801, -inf
        %1822 = vmax.xlane.f32.xlu0 %v1821
        %v1823 = vpop.xlane.xlu0 %1822
        %v1824 = vsel %vm1635, %v1802, -inf
        %1825 = vmax.xlane.f32.xlu0 %v1824
        %v1826 = vpop.xlane.xlu0 %1825
        %v1827 = vsub.f32 %v1795, %v1805
        %v1828 = vsub.f32 %v1796, %v1808
        %v1829 = vsub.f32 %v1797, %v1811
        %v1830 = vsub.f32 %v1798, %v1814
        %v1831 = vsub.f32 %v1799, %v1817
        %v1832 = vsub.f32 %v1800, %v1820
        %v1833 = vsub.f32 %v1801, %v1823
        %v1834 = vsub.f32 %v1802, %v1826
        %v1835 = vmul.f32 %v1827, 1.442695
        %v1836 = vpow.pop %v1835
        %v1837 = vmul.f32 %v1828, 1.442695
        %v1838 = vpow.pop %v1837
        %v1839 = vmul.f32 %v1829, 1.442695
        %v1840 = vpow.pop %v1839
        %v1841 = vmul.f32 %v1830, 1.442695
        %v1842 = vpow.pop %v1841
        %v1843 = vmul.f32 %v1831, 1.442695
        %v1844 = vpow.pop %v1843
        %v1845 = vmul.f32 %v1832, 1.442695
        %v1846 = vpow.pop %v1845
        %v1847 = vmul.f32 %v1833, 1.442695
        %v1848 = vpow.pop %v1847
        %v1849 = vmul.f32 %v1834, 1.442695
        %v1850 = vpow.pop %v1849
        %v1851 = vsel %vm1635, %v1836, 0.0
        %1852 = vadd.xlane.f32.xlu0 %v1851
        %v1853 = vpop.xlane.xlu0 %1852
        %v1854 = vsel %vm1635, %v1838, 0.0
        %1855 = vadd.xlane.f32.xlu0 %v1854
        %v1856 = vpop.xlane.xlu0 %1855
        %v1857 = vsel %vm1635, %v1840, 0.0
        %1858 = vadd.xlane.f32.xlu0 %v1857
        %v1859 = vpop.xlane.xlu0 %1858
        %v1860 = vsel %vm1635, %v1842, 0.0
        %1861 = vadd.xlane.f32.xlu0 %v1860
        %v1862 = vpop.xlane.xlu0 %1861
        %v1863 = vsel %vm1635, %v1844, 0.0
        %1864 = vadd.xlane.f32.xlu0 %v1863
        %v1865 = vpop.xlane.xlu0 %1864
        %v1866 = vsel %vm1635, %v1846, 0.0
        %1867 = vadd.xlane.f32.xlu0 %v1866
        %v1868 = vpop.xlane.xlu0 %1867
        %v1869 = vsel %vm1635, %v1848, 0.0
        %1870 = vadd.xlane.f32.xlu0 %v1869
        %v1871 = vpop.xlane.xlu0 %1870
        %v1872 = vsel %vm1635, %v1850, 0.0
        %1873 = vadd.xlane.f32.xlu0 %v1872
        %v1874 = vpop.xlane.xlu0 %1873
        %v1875 = vrcp.pop %v1853
        %v1876 = vrcp.pop %v1856
        %v1877 = vrcp.pop %v1859
        %v1878 = vrcp.pop %v1862
        %v1879 = vrcp.pop %v1865
        %v1880 = vrcp.pop %v1868
        %v1881 = vrcp.pop %v1871
        %v1882 = vrcp.pop %v1874
        %v1883 = vmul.f32 %v1836, %v1875
        %v1884 = vmul.f32 %v1838, %v1876
        %v1885 = vmul.f32 %v1840, %v1877
        %v1886 = vmul.f32 %v1842, %v1878
        %v1887 = vmul.f32 %v1844, %v1879
        %v1888 = vmul.f32 %v1846, %v1880
        %v1889 = vmul.f32 %v1848, %v1881
        %v1890 = vmul.f32 %v1850, %v1882
        %v1891 = vpack.c.bf16 %v1883, %v1883
        %v1892 = vpack.c.bf16 %v1884, %v1884
        %v1893 = vpack.c.bf16 %v1885, %v1885
        %v1894 = vpack.c.bf16 %v1886, %v1886
        %v1895 = vpack.c.bf16 %v1887, %v1887
        %v1896 = vpack.c.bf16 %v1888, %v1888
        %v1897 = vpack.c.bf16 %v1889, %v1889
        %v1898 = vpack.c.bf16 %v1890, %v1890
        %v1899 = vpack.c.bf16 %v1558, %v1558
        %v1900 = vpack.c.bf16 %v1560, %v1560
        %v1901 = vpack.c.bf16 %v1562, %v1562
        %v1902 = vpack.c.bf16 %v1564, %v1564
        %v1903 = vpack.c.bf16 %v1612, %v1612
        %v1904 = vpack.c.bf16 %v1614, %v1614
        %v1905 = vpack.c.bf16 %v1616, %v1616
        %v1906 = vpack.c.bf16 %v1618, %v1618
        %v1908 = vsel %vm1635, %v1891, 0
        %vm1910 = vcmask 1043456
        %v1912 = vsel %vm1910, %v1899, 0
        %1914 = vmatpush.bf16.msra.mxu0 0
        %1915 = vmatpush.bf16.msra.mxu0 0
        %1916 = vmatpush.bf16.msra.mxu0 0
        %1917 = vmatpush.bf16.msra.mxu0 0
        %1918 = vmatpush.bf16.msra.mxu0 0
        %1919 = vmatpush.bf16.msra.mxu0 0
        %1920 = vmatpush.bf16.msra.mxu0 0
        %1921 = vmatpush.bf16.msra.mxu0 %v1912
        %1922 = vmatmul.bf16.gmra.mxu0 %v1908
        %v1923 = vpop.f32.mrf.mxu0
        %v1924 = vadd.f32 0.0, %v1923
        %v1925 = vpop.f32.mrf.mxu0
        %1926 = vdwg.mxu0
        %v1928 = vsel %vm1635, %v1892, 0
        %v1931 = vsel %vm1910, %v1900, 0
        %1933 = vmatpush.bf16.msra.mxu0 0
        %1934 = vmatpush.bf16.msra.mxu0 0
        %1935 = vmatpush.bf16.msra.mxu0 0
        %1936 = vmatpush.bf16.msra.mxu0 0
        %1937 = vmatpush.bf16.msra.mxu0 0
        %1938 = vmatpush.bf16.msra.mxu0 0
        %1939 = vmatpush.bf16.msra.mxu0 0
        %1940 = vmatpush.bf16.msra.mxu0 %v1931
        %1941 = vmatmul.bf16.gmra.mxu0 %v1928
        %v1942 = vpop.f32.mrf.mxu0
        %v1943 = vadd.f32 0.0, %v1942
        %v1944 = vpop.f32.mrf.mxu0
        %1945 = vdwg.mxu0
        %v1947 = vsel %vm1635, %v1893, 0
        %v1950 = vsel %vm1910, %v1901, 0
        %1952 = vmatpush.bf16.msra.mxu0 0
        %1953 = vmatpush.bf16.msra.mxu0 0
        %1954 = vmatpush.bf16.msra.mxu0 0
        %1955 = vmatpush.bf16.msra.mxu0 0
        %1956 = vmatpush.bf16.msra.mxu0 0
        %1957 = vmatpush.bf16.msra.mxu0 0
        %1958 = vmatpush.bf16.msra.mxu0 0
        %1959 = vmatpush.bf16.msra.mxu0 %v1950
        %1960 = vmatmul.bf16.gmra.mxu0 %v1947
        %v1961 = vpop.f32.mrf.mxu0
        %v1962 = vadd.f32 0.0, %v1961
        %v1963 = vpop.f32.mrf.mxu0
        %1964 = vdwg.mxu0
        %v1966 = vsel %vm1635, %v1894, 0
        %v1969 = vsel %vm1910, %v1902, 0
        %1971 = vmatpush.bf16.msra.mxu0 0
        %1972 = vmatpush.bf16.msra.mxu0 0
        %1973 = vmatpush.bf16.msra.mxu0 0
        %1974 = vmatpush.bf16.msra.mxu0 0
        %1975 = vmatpush.bf16.msra.mxu0 0
        %1976 = vmatpush.bf16.msra.mxu0 0
        %1977 = vmatpush.bf16.msra.mxu0 0
        %1978 = vmatpush.bf16.msra.mxu0 %v1969
        %1979 = vmatmul.bf16.gmra.mxu0 %v1966
        %v1980 = vpop.f32.mrf.mxu0
        %v1981 = vadd.f32 0.0, %v1980
        %v1982 = vpop.f32.mrf.mxu0
        %1983 = vdwg.mxu0
        %v1985 = vsel %vm1635, %v1895, 0
        %v1988 = vsel %vm1910, %v1903, 0
        %1990 = vmatpush.bf16.msra.mxu0 0
        %1991 = vmatpush.bf16.msra.mxu0 0
        %1992 = vmatpush.bf16.msra.mxu0 0
        %1993 = vmatpush.bf16.msra.mxu0 0
        %1994 = vmatpush.bf16.msra.mxu0 0
        %1995 = vmatpush.bf16.msra.mxu0 0
        %1996 = vmatpush.bf16.msra.mxu0 0
        %1997 = vmatpush.bf16.msra.mxu0 %v1988
        %1998 = vmatmul.bf16.gmra.mxu0 %v1985
        %v1999 = vpop.f32.mrf.mxu0
        %v2000 = vadd.f32 0.0, %v1999
        %v2001 = vpop.f32.mrf.mxu0
        %2002 = vdwg.mxu0
        %v2004 = vsel %vm1635, %v1896, 0
        %v2007 = vsel %vm1910, %v1904, 0
        %2009 = vmatpush.bf16.msra.mxu0 0
        %2010 = vmatpush.bf16.msra.mxu0 0
        %2011 = vmatpush.bf16.msra.mxu0 0
        %2012 = vmatpush.bf16.msra.mxu0 0
        %2013 = vmatpush.bf16.msra.mxu0 0
        %2014 = vmatpush.bf16.msra.mxu0 0
        %2015 = vmatpush.bf16.msra.mxu0 0
        %2016 = vmatpush.bf16.msra.mxu0 %v2007
        %2017 = vmatmul.bf16.gmra.mxu0 %v2004
        %v2018 = vpop.f32.mrf.mxu0
        %v2019 = vadd.f32 0.0, %v2018
        %v2020 = vpop.f32.mrf.mxu0
        %2021 = vdwg.mxu0
        %v2023 = vsel %vm1635, %v1897, 0
        %v2026 = vsel %vm1910, %v1905, 0
        %2028 = vmatpush.bf16.msra.mxu0 0
        %2029 = vmatpush.bf16.msra.mxu0 0
        %2030 = vmatpush.bf16.msra.mxu0 0
        %2031 = vmatpush.bf16.msra.mxu0 0
        %2032 = vmatpush.bf16.msra.mxu0 0
        %2033 = vmatpush.bf16.msra.mxu0 0
        %2034 = vmatpush.bf16.msra.mxu0 0
        %2035 = vmatpush.bf16.msra.mxu0 %v2026
        %2036 = vmatmul.bf16.gmra.mxu0 %v2023
        %v2037 = vpop.f32.mrf.mxu0
        %v2038 = vadd.f32 0.0, %v2037
        %v2039 = vpop.f32.mrf.mxu0
        %2040 = vdwg.mxu0
        %v2042 = vsel %vm1635, %v1898, 0
        %v2045 = vsel %vm1910, %v1906, 0
        %2047 = vmatpush.bf16.msra.mxu0 0
        %2048 = vmatpush.bf16.msra.mxu0 0
        %2049 = vmatpush.bf16.msra.mxu0 0
        %2050 = vmatpush.bf16.msra.mxu0 0
        %2051 = vmatpush.bf16.msra.mxu0 0
        %2052 = vmatpush.bf16.msra.mxu0 0
        %2053 = vmatpush.bf16.msra.mxu0 0
        %2054 = vmatpush.bf16.msra.mxu0 %v2045
        %2055 = vmatmul.bf16.gmra.mxu0 %v2042
        %v2056 = vpop.f32.mrf.mxu0
        %v2057 = vadd.f32 0.0, %v2056
        %v2058 = vpop.f32.mrf.mxu0
        %2059 = vdwg.mxu0
        %v2060 = vrot.slane %v1962, 4
        %v2061 = vsel %vm903, %v2060, %v1924
        %v2062 = vrot.slane %v1924, 4
        %v2063 = vsel %vm903, %v1962, %v2062
        %v2065 = vunpack.c.l.s4 1983009808
        %v2066 = vunpack.c.0.s8 %v2065
        %v2067 = vperm.slane %v2061, %v2066
        %v2069 = vunpack.c.l.s4 1983009808
        %v2070 = vunpack.c.0.s8 %v2069
        %v2071 = vperm.slane %v2063, %v2070
        %v2072 = vrot.slane %v1981, 4
        %v2073 = vsel %vm903, %v2072, %v1943
        %v2074 = vrot.slane %v1943, 4
        %v2075 = vsel %vm903, %v1981, %v2074
        %v2077 = vunpack.c.l.s4 1983009808
        %v2078 = vunpack.c.0.s8 %v2077
        %v2079 = vperm.slane %v2073, %v2078
        %v2081 = vunpack.c.l.s4 1983009808
        %v2082 = vunpack.c.0.s8 %v2081
        %v2083 = vperm.slane %v2075, %v2082
        %v2084 = vrot.slane %v2079, 4
        %v2085 = vsel %vm903, %v2084, %v2067
        %v2086 = vrot.slane %v2067, 4
        %v2087 = vsel %vm903, %v2079, %v2086
        %v2089 = vunpack.c.l.s4 1934713408
        %v2090 = vunpack.c.0.s8 %v2089
        %v2091 = vperm.slane %v2085, %v2090
        %v2093 = vunpack.c.l.s4 1934713408
        %v2094 = vunpack.c.0.s8 %v2093
        %v2095 = vperm.slane %v2087, %v2094
        %v2096 = vrot.slane %v2083, 4
        %v2097 = vsel %vm903, %v2096, %v2071
        %v2098 = vrot.slane %v2071, 4
        %v2099 = vsel %vm903, %v2083, %v2098
        %v2101 = vunpack.c.l.s4 1934713408
        %v2102 = vunpack.c.0.s8 %v2101
        %v2103 = vperm.slane %v2097, %v2102
        %v2105 = vunpack.c.l.s4 1934713408
        %v2106 = vunpack.c.0.s8 %v2105
        %v2107 = vperm.slane %v2099, %v2106
        %v2108 = vrot.slane %v2091, 4
        %v2109 = vsel %vm903, 0.0, %v2108
        %v2110 = vrot.slane %v2095, 4
        %v2111 = vsel %vm903, 0.0, %v2110
        %v2112 = vrot.slane %v2103, 4
        %v2113 = vsel %vm903, 0.0, %v2112
        %v2114 = vrot.slane %v2107, 4
        %v2115 = vsel %vm903, 0.0, %v2114
        %v2116 = vrot.slane %v2038, 4
        %v2117 = vsel %vm903, %v2116, %v2000
        %v2118 = vrot.slane %v2000, 4
        %v2119 = vsel %vm903, %v2038, %v2118
        %v2121 = vunpack.c.l.s4 1983009808
        %v2122 = vunpack.c.0.s8 %v2121
        %v2123 = vperm.slane %v2117, %v2122
        %v2125 = vunpack.c.l.s4 1983009808
        %v2126 = vunpack.c.0.s8 %v2125
        %v2127 = vperm.slane %v2119, %v2126
        %v2128 = vrot.slane %v2057, 4
        %v2129 = vsel %vm903, %v2128, %v2019
        %v2130 = vrot.slane %v2019, 4
        %v2131 = vsel %vm903, %v2057, %v2130
        %v2133 = vunpack.c.l.s4 1983009808
        %v2134 = vunpack.c.0.s8 %v2133
        %v2135 = vperm.slane %v2129, %v2134
        %v2137 = vunpack.c.l.s4 1983009808
        %v2138 = vunpack.c.0.s8 %v2137
        %v2139 = vperm.slane %v2131, %v2138
        %v2140 = vrot.slane %v2135, 4
        %v2141 = vsel %vm903, %v2140, %v2123
        %v2142 = vrot.slane %v2123, 4
        %v2143 = vsel %vm903, %v2135, %v2142
        %v2145 = vunpack.c.l.s4 1934713408
        %v2146 = vunpack.c.0.s8 %v2145
        %v2147 = vperm.slane %v2141, %v2146
        %v2149 = vunpack.c.l.s4 1934713408
        %v2150 = vunpack.c.0.s8 %v2149
        %v2151 = vperm.slane %v2143, %v2150
        %v2152 = vrot.slane %v2139, 4
        %v2153 = vsel %vm903, %v2152, %v2127
        %v2154 = vrot.slane %v2127, 4
        %v2155 = vsel %vm903, %v2139, %v2154
        %v2157 = vunpack.c.l.s4 1934713408
        %v2158 = vunpack.c.0.s8 %v2157
        %v2159 = vperm.slane %v2153, %v2158
        %v2161 = vunpack.c.l.s4 1934713408
        %v2162 = vunpack.c.0.s8 %v2161
        %v2163 = vperm.slane %v2155, %v2162
        %v2164 = vrot.slane %v2147, 4
        %v2165 = vsel %vm903, 0.0, %v2164
        %v2166 = vrot.slane %v2151, 4
        %v2167 = vsel %vm903, 0.0, %v2166
        %v2168 = vrot.slane %v2159, 4
        %v2169 = vsel %vm903, 0.0, %v2168
        %v2170 = vrot.slane %v2163, 4
        %v2171 = vsel %vm903, 0.0, %v2170
        %v2172 = vsel %vm903, %v2110, %v2091
        %v2174 = vunpack.c.l.s4 1983009808
        %v2175 = vunpack.c.0.s8 %v2174
        %v2176 = vperm.slane %v2172, %v2175
        %v2177 = vrot.slane %v2111, 4
        %v2178 = vsel %vm903, %v2177, %v2109
        %v2180 = vunpack.c.l.s4 1983009808
        %v2181 = vunpack.c.0.s8 %v2180
        %v2182 = vperm.slane %v2178, %v2181
        %v2183 = vsel %vm903, %v2114, %v2103
        %v2185 = vunpack.c.l.s4 1983009808
        %v2186 = vunpack.c.0.s8 %v2185
        %v2187 = vperm.slane %v2183, %v2186
        %v2188 = vrot.slane %v2115, 4
        %v2189 = vsel %vm903, %v2188, %v2113
        %v2191 = vunpack.c.l.s4 1983009808
        %v2192 = vunpack.c.0.s8 %v2191
        %v2193 = vperm.slane %v2189, %v2192
        %v2194 = vrot.slane %v2182, 4
        %v2195 = vsel %vm903, %v2194, %v2176
        %v2196 = vrot.slane %v2176, 4
        %v2197 = vsel %vm903, %v2182, %v2196
        %v2199 = vunpack.c.l.s4 1934713408
        %v2200 = vunpack.c.0.s8 %v2199
        %v2201 = vperm.slane %v2195, %v2200
        %v2203 = vunpack.c.l.s4 1934713408
        %v2204 = vunpack.c.0.s8 %v2203
        %v2205 = vperm.slane %v2197, %v2204
        %v2206 = vrot.slane %v2193, 4
        %v2207 = vsel %vm903, %v2206, %v2187
        %v2208 = vrot.slane %v2187, 4
        %v2209 = vsel %vm903, %v2193, %v2208
        %v2211 = vunpack.c.l.s4 1934713408
        %v2212 = vunpack.c.0.s8 %v2211
        %v2213 = vperm.slane %v2207, %v2212
        %v2215 = vunpack.c.l.s4 1934713408
        %v2216 = vunpack.c.0.s8 %v2215
        %v2217 = vperm.slane %v2209, %v2216
        %v2218 = vrot.slane %v2213, 4
        %v2219 = vsel %vm903, %v2218, %v2201
        %v2220 = vrot.slane %v2201, 4
        %v2221 = vsel %vm903, %v2213, %v2220
        %v2222 = vrot.slane %v2217, 4
        %v2223 = vsel %vm903, %v2222, %v2205
        %v2224 = vrot.slane %v2205, 4
        %v2225 = vsel %vm903, %v2217, %v2224
        %v2226 = vsel %vm903, %v2166, %v2147
        %v2228 = vunpack.c.l.s4 1983009808
        %v2229 = vunpack.c.0.s8 %v2228
        %v2230 = vperm.slane %v2226, %v2229
        %v2231 = vrot.slane %v2167, 4
        %v2232 = vsel %vm903, %v2231, %v2165
        %v2234 = vunpack.c.l.s4 1983009808
        %v2235 = vunpack.c.0.s8 %v2234
        %v2236 = vperm.slane %v2232, %v2235
        %v2237 = vsel %vm903, %v2170, %v2159
        %v2239 = vunpack.c.l.s4 1983009808
        %v2240 = vunpack.c.0.s8 %v2239
        %v2241 = vperm.slane %v2237, %v2240
        %v2242 = vrot.slane %v2171, 4
        %v2243 = vsel %vm903, %v2242, %v2169
        %v2245 = vunpack.c.l.s4 1983009808
        %v2246 = vunpack.c.0.s8 %v2245
        %v2247 = vperm.slane %v2243, %v2246
        %v2248 = vrot.slane %v2236, 4
        %v2249 = vsel %vm903, %v2248, %v2230
        %v2250 = vrot.slane %v2230, 4
        %v2251 = vsel %vm903, %v2236, %v2250
        %v2253 = vunpack.c.l.s4 1934713408
        %v2254 = vunpack.c.0.s8 %v2253
        %v2255 = vperm.slane %v2249, %v2254
        %v2257 = vunpack.c.l.s4 1934713408
        %v2258 = vunpack.c.0.s8 %v2257
        %v2259 = vperm.slane %v2251, %v2258
        %v2260 = vrot.slane %v2247, 4
        %v2261 = vsel %vm903, %v2260, %v2241
        %v2262 = vrot.slane %v2241, 4
        %v2263 = vsel %vm903, %v2247, %v2262
        %v2265 = vunpack.c.l.s4 1934713408
        %v2266 = vunpack.c.0.s8 %v2265
        %v2267 = vperm.slane %v2261, %v2266
        %v2269 = vunpack.c.l.s4 1934713408
        %v2270 = vunpack.c.0.s8 %v2269
        %v2271 = vperm.slane %v2263, %v2270
        %v2272 = vrot.slane %v2267, 4
        %v2273 = vsel %vm903, %v2272, %v2255
        %v2274 = vrot.slane %v2255, 4
        %v2275 = vsel %vm903, %v2267, %v2274
        %v2276 = vrot.slane %v2271, 4
        %v2277 = vsel %vm903, %v2276, %v2259
        %v2278 = vrot.slane %v2259, 4
        %v2279 = vsel %vm903, %v2271, %v2278
        %2282 = vrot.lane.b32.xlu0 %v2221, 8
        %v2283 = vpop.permute.xlu0 %2282
        %2284 = vrot.lane.b32.xlu0 %v2275, 8
        %v2285 = vpop.permute.xlu0 %2284
        %2290 = vrot.lane.b32.xlu0 %v2223, 16
        %v2291 = vpop.permute.xlu0 %2290
        %2292 = vrot.lane.b32.xlu0 %v2277, 16
        %v2293 = vpop.permute.xlu0 %2292
        %2298 = vrot.lane.b32.xlu0 %v2225, 24
        %v2299 = vpop.permute.xlu0 %2298
        %2300 = vrot.lane.b32.xlu0 %v2279, 24
        %v2301 = vpop.permute.xlu0 %2300
        %v2304 = vsel %vm1635, %v2219, %v2283
        %v2305 = vsel %vm1635, %v2273, %v2285
        %vm2306 = vcmask 130048
        %v2307 = vsel %vm2306, %v2304, %v2291
        %v2308 = vsel %vm2306, %v2305, %v2293
        %vm2309 = vcmask 195584
        %v2310 = vsel %vm2309, %v2307, %v2299
        %v2311 = vsel %vm2309, %v2308, %v2301
        %v2312 = vpack.c.bf16 %v2311, %v2310
        %v2313 = vld [vmem:[%s739] sm:$0xf]
        %v2314 = vld [vmem:[%s739 + $0x4] sm:$0xf]
        %v2315 = vld [vmem:[%s739 + $0x8] sm:$0xf]
        %v2316 = vld [vmem:[%s739 + $0xc] sm:$0xf]
        %v2317 = vld [vmem:[%s742] sm:$0x1]
        %v2319 = vperm.slane %v2317, 0
        %v2325 = vunpack.c.l.b16 %v2313
        %v2326 = vunpack.c.l.b16 %v2314
        %v2327 = vunpack.c.l.b16 %v2315
        %v2328 = vunpack.c.l.b16 %v2316
        %v2329 = vpack.c.b16 %v2326, %v2325
        %v2330 = vpack.c.b16 %v2328, %v2327
        %v2334 = vsel %vm782, %v2312, 0
        %2336 = vmatpush.bf16.msra.mxu0 0
        %2337 = vmatpush.bf16.msra.mxu0 0
        %2338 = vmatpush.bf16.msra.mxu0 0
        %2339 = vmatpush.bf16.msra.mxu0 0
        %2340 = vmatpush.bf16.msra.mxu0 0
        %2341 = vmatpush.bf16.msra.mxu0 0
        %2342 = vmatpush.bf16.msra.mxu0 %v2330
        %2343 = vmatpush.bf16.msra.mxu0 %v2329
        %2344 = vmatmul.bf16.gmra.mxu0 %v2334
        %v2345 = vpop.f32.mrf.mxu0
        %v2346 = vadd.f32 %v2319, %v2345
        %v2347 = vpop.f32.mrf.mxu0
        %v2348 = vadd.f32 %v2319, %v2347
        %2349 = vdwg.mxu0
        %v2350 = vadd.f32 %v778, %v2346
        %v2351 = vadd.f32 %v779, %v2348
        %v2352 = vld [vmem:[%s745] sm:$0x1]
        %v2353 = vld [vmem:[%s748] sm:$0x1]
        %v2354 = vsel %vm782, %v2350, 0.0
        %2355 = vadd.xlane.f32.xlu0 %v2354
        %v2356 = vpop.xlane.xlu0 %2355
        %v2357 = vsel %vm782, %v2351, 0.0
        %2358 = vadd.xlane.f32.xlu0 %v2357
        %v2359 = vpop.xlane.xlu0 %2358
        %v2360 = vmul.f32 %v2356, %v795
        %v2361 = vmul.f32 %v2359, %v795
        %v2362 = vsub.f32 %v2350, %v2360
        %v2363 = vsub.f32 %v2351, %v2361
        %v2364 = vmul.f32 %v2362, %v2362
        %v2365 = vmul.f32 %v2363, %v2363
        %v2366 = vsel %vm782, %v2364, 0.0
        %2367 = vadd.xlane.f32.xlu0 %v2366
        %v2368 = vpop.xlane.xlu0 %2367
        %v2369 = vsel %vm782, %v2365, 0.0
        %2370 = vadd.xlane.f32.xlu0 %v2369
        %v2371 = vpop.xlane.xlu0 %2370
        %v2372 = vmul.f32 %v2368, %v795
        %v2373 = vmul.f32 %v2371, %v795
        %v2374 = vadd.f32 %v2372, 1e-05
        %v2375 = vadd.f32 %v2373, 1e-05
        %v2376 = vrsqrt.pop %v2374
        %v2377 = vmul.f32 %v2376, %v2374
        %v2378 = vmul.f32 %v2377, %v2376
        %v2379 = vmul.f32 0.5, %v2378
        %v2380 = vsub.f32 1.5, %v2379
        %v2381 = vmul.f32 %v2376, %v2380
        %vm2382 = vweird.f32 %v2374
        %vm2383 = vweird.f32 %v2376
        %vm2384 = vmor %vm2382, %vm2383
        %v2385 = vsel %vm2384, %v2376, %v2381
        %v2386 = vrsqrt.pop %v2375
        %v2387 = vmul.f32 %v2386, %v2375
        %v2388 = vmul.f32 %v2387, %v2386
        %v2389 = vmul.f32 0.5, %v2388
        %v2390 = vsub.f32 1.5, %v2389
        %v2391 = vmul.f32 %v2386, %v2390
        %vm2392 = vweird.f32 %v2375
        %vm2393 = vweird.f32 %v2386
        %vm2394 = vmor %vm2392, %vm2393
        %v2395 = vsel %vm2394, %v2386, %v2391
        %v2396 = vmul.f32 %v2362, %v2385
        %v2397 = vmul.f32 %v2363, %v2395
        %v2399 = vperm.slane %v2352, 0
        %v2401 = vmul.f32 %v2396, %v2399
        %v2402 = vmul.f32 %v2397, %v2399
        %v2404 = vperm.slane %v2353, 0
        %v2406 = vadd.f32 %v2401, %v2404
        %v2407 = vadd.f32 %v2402, %v2404
        %v2408 = vpack.c.bf16 %v2407, %v2406
        %v2409 = vld [vmem:[%s753] sm:$0xf]
        %v2410 = vld [vmem:[%s753 + $0x4] sm:$0xf]
        %v2411 = vld [vmem:[%s753 + $0x8] sm:$0xf]
        %v2412 = vld [vmem:[%s753 + $0xc] sm:$0xf]
        %v2413 = vld [vmem:[%s756] sm:$0x1]
        %v2415 = vperm.slane %v2413, 0
        %v2421 = vunpack.c.l.b16 %v2409
        %v2422 = vunpack.c.l.b16 %v2410
        %v2423 = vunpack.c.l.b16 %v2411
        %v2424 = vunpack.c.l.b16 %v2412
        %v2425 = vpack.c.b16 %v2422, %v2421
        %v2426 = vpack.c.b16 %v2424, %v2423
        %v2430 = vsel %vm782, %v2408, 0
        %2432 = vmatpush.bf16.msra.mxu0 0
        %2433 = vmatpush.bf16.msra.mxu0 0
        %2434 = vmatpush.bf16.msra.mxu0 0
        %2435 = vmatpush.bf16.msra.mxu0 0
        %2436 = vmatpush.bf16.msra.mxu0 0
        %2437 = vmatpush.bf16.msra.mxu0 0
        %2438 = vmatpush.bf16.msra.mxu0 %v2426
        %2439 = vmatpush.bf16.msra.mxu0 %v2425
        %2440 = vmatmul.bf16.gmra.mxu0 %v2430
        %v2441 = vpop.f32.mrf.mxu0
        %v2442 = vadd.f32 %v2415, %v2441
        %v2443 = vpop.f32.mrf.mxu0
        %v2444 = vadd.f32 %v2415, %v2443
        %2445 = vdwg.mxu0
        %v2446 = vmul.f32 %v2442, 1.702
        %v2447 = vmul.f32 %v2444, 1.702
        %v2448 = vxor.u32 %v2446, 2147483648
        %v2449 = vxor.u32 %v2447, 2147483648
        %v2450 = vmul.f32 %v2448, 1.442695
        %v2451 = vpow.pop %v2450
        %v2452 = vmul.f32 %v2449, 1.442695
        %v2453 = vpow.pop %v2452
        %v2454 = vadd.f32 %v2451, 1.0
        %v2455 = vadd.f32 %v2453, 1.0
        %v2456 = vrcp.pop %v2454
        %v2457 = vmul.f32 %v2454, %v2456
        %v2458 = vsub.f32 1.0, %v2457
        %v2459 = vmul.f32 %v2456, %v2458
        %v2460 = vadd.f32 %v2456, %v2459
        %vm2461 = vweird.f32 %v2454
        %vm2462 = vweird.f32 %v2456
        %vm2463 = vmor %vm2461, %vm2462
        %v2464 = vsel %vm2463, %v2456, %v2460
        %v2465 = vand.u32 2147483647, %v2454
        %vm2466 = vcmp.eq.f32.partialorder %v2465, 8.507059e+37
        %v2467 = vand.u32 %v2454, 2147483648
        %v2468 = vor.u32 1.1754944e-38, %v2467
        %v2469 = vsel %vm2466, %v2468, %v2464
        %v2470 = vmul.f32 1.0, %v2469
        %v2471 = vrcp.pop %v2455
        %v2472 = vmul.f32 %v2455, %v2471
        %v2473 = vsub.f32 1.0, %v2472
        %v2474 = vmul.f32 %v2471, %v2473
        %v2475 = vadd.f32 %v2471, %v2474
        %vm2476 = vweird.f32 %v2455
        %vm2477 = vweird.f32 %v2471
        %vm2478 = vmor %vm2476, %vm2477
        %v2479 = vsel %vm2478, %v2471, %v2475
        %v2480 = vand.u32 2147483647, %v2455
        %vm2481 = vcmp.eq.f32.partialorder %v2480, 8.507059e+37
        %v2482 = vand.u32 %v2455, 2147483648
        %v2483 = vor.u32 1.1754944e-38, %v2482
        %v2484 = vsel %vm2481, %v2483, %v2479
        %v2485 = vmul.f32 1.0, %v2484
        %v2486 = vmul.f32 %v2442, %v2470
        %v2487 = vmul.f32 %v2444, %v2485
        %v2488 = vpack.c.bf16 %v2487, %v2486
        %v2489 = vld [vmem:[%s761] sm:$0xf]
        %v2490 = vld [vmem:[%s761 + $0x4] sm:$0xf]
        %v2491 = vld [vmem:[%s761 + $0x8] sm:$0xf]
        %v2492 = vld [vmem:[%s761 + $0xc] sm:$0xf]
        %v2493 = vld [vmem:[%s761 + $0x10] sm:$0xf]
        %v2494 = vld [vmem:[%s761 + $0x14] sm:$0xf]
        %v2495 = vld [vmem:[%s761 + $0x18] sm:$0xf]
        %v2496 = vld [vmem:[%s761 + $0x1c] sm:$0xf]
        %v2497 = vld [vmem:[%s761 + $0x20] sm:$0xf]
        %v2498 = vld [vmem:[%s761 + $0x24] sm:$0xf]
        %v2499 = vld [vmem:[%s761 + $0x28] sm:$0xf]
        %v2500 = vld [vmem:[%s761 + $0x2c] sm:$0xf]
        %v2501 = vld [vmem:[%s761 + $0x30] sm:$0xf]
        %v2502 = vld [vmem:[%s761 + $0x34] sm:$0xf]
        %v2503 = vld [vmem:[%s761 + $0x38] sm:$0xf]
        %v2504 = vld [vmem:[%s761 + $0x3c] sm:$0xf]
        %v2505 = vld [vmem:[%s764] sm:$0x1]
        %v2507 = vperm.slane %v2505, 0
        %v2525 = vunpack.c.l.b16 %v2489
        %v2526 = vunpack.c.l.b16 %v2490
        %v2527 = vunpack.c.l.b16 %v2491
        %v2528 = vunpack.c.l.b16 %v2492
        %v2529 = vunpack.c.l.b16 %v2493
        %v2530 = vunpack.c.l.b16 %v2494
        %v2531 = vunpack.c.l.b16 %v2495
        %v2532 = vunpack.c.l.b16 %v2496
        %v2533 = vunpack.c.l.b16 %v2497
        %v2534 = vunpack.c.l.b16 %v2498
        %v2535 = vunpack.c.l.b16 %v2499
        %v2536 = vunpack.c.l.b16 %v2500
        %v2537 = vunpack.c.l.b16 %v2501
        %v2538 = vunpack.c.l.b16 %v2502
        %v2539 = vunpack.c.l.b16 %v2503
        %v2540 = vunpack.c.l.b16 %v2504
        %v2541 = vpack.c.b16 %v2526, %v2525
        %v2542 = vpack.c.b16 %v2528, %v2527
        %v2543 = vpack.c.b16 %v2530, %v2529
        %v2544 = vpack.c.b16 %v2532, %v2531
        %v2545 = vpack.c.b16 %v2534, %v2533
        %v2546 = vpack.c.b16 %v2536, %v2535
        %v2547 = vpack.c.b16 %v2538, %v2537
        %v2548 = vpack.c.b16 %v2540, %v2539
        %2557 = vmatpush.bf16.msra.mxu0 %v2548
        %2558 = vmatpush.bf16.msra.mxu0 %v2547
        %2559 = vmatpush.bf16.msra.mxu0 %v2546
        %2560 = vmatpush.bf16.msra.mxu0 %v2545
        %2561 = vmatpush.bf16.msra.mxu0 %v2544
        %2562 = vmatpush.bf16.msra.mxu0 %v2543
        %2563 = vmatpush.bf16.msra.mxu0 %v2542
        %2564 = vmatpush.bf16.msra.mxu0 %v2541
        %2565 = vmatmul.bf16.gmra.mxu0 %v2488
        %v2566 = vpop.f32.mrf.mxu0
        %v2567 = vadd.f32 %v2507, %v2566
        %v2568 = vpop.f32.mrf.mxu0
        %v2569 = vadd.f32 %v2507, %v2568
        %2570 = vdwg.mxu0
        %v2571 = vadd.f32 %v2350, %v2567
        %v2572 = vadd.f32 %v2351, %v2569
        %2573 = vst.msk [vmem:[#allocation2] sm:$0xff] %vm782, %v2571
        %2574 = vst.msk [vmem:[#allocation2 + $0x8] sm:$0xff] %vm782, %v2572
        %p2575 = scmp.eq.s32.totalorder %s34, 1
        // Predicated region
        $region93: #{tpu_custom_call.1} parent=87 // pred_check
          %p2576 = pneg %p2575
        $region94: #{tpu_custom_call.1} parent=87 // pred_check_branch
          %2578 = sbr.rel (%p2576) target = $region96
        $region95: #{tpu_custom_call.1} parent=87 // pred_region
          %v2579 = vld [vmem:[%s719] sm:$0x1]
          %v2580 = vld [vmem:[%s719 + $0x1] sm:$0x1]
          %v2581 = vperm.slane %v2579, 0
          %v2582 = vlaneseq
          %v2583 = vshrl.u32 %v2582, 7
          %2585 = vset.pattern.permute.xlu0 %v2583
          %2586 = vperm.xlu0 %2585, %v2581
          %v2587 = vpop.permute.xlu0 %2586
          %v2588 = vperm.slane %v2580, 0
          %v2589 = vlaneseq
          %v2590 = vshrl.u32 %v2589, 7
          %2592 = vset.pattern.permute.xlu0 %v2590
          %2593 = vperm.xlu0 %2592, %v2588
          %v2594 = vpop.permute.xlu0 %2593
          %v2595 = vmul.f32 %v2571, %v2587
          %v2596 = vmul.f32 %v2572, %v2594
          %v2597 = vsel %vm782, %v2595, 0.0
          %v2598 = vrot.slane %v2597, 4
          %v2599 = vadd.f32 %v2597, %v2598
          %v2600 = vrot.slane %v2599, 2
          %v2601 = vadd.f32 %v2599, %v2600
          %v2602 = vrot.slane %v2601, 1
          %v2603 = vadd.f32 %v2601, %v2602
          %v2604 = vsel %vm782, %v2596, 0.0
          %v2605 = vrot.slane %v2604, 4
          %v2606 = vadd.f32 %v2604, %v2605
          %v2607 = vrot.slane %v2606, 2
          %v2608 = vadd.f32 %v2606, %v2607
          %v2609 = vrot.slane %v2608, 1
          %v2610 = vadd.f32 %v2608, %v2609
          %v2611 = vld [vmem:[%s14] sm:$0x1]
          %v2612 = vld [vmem:[%s15] sm:$0x1]
          %vm2615 = vcmask 1041409
          %v2616 = vsel %vm2615, %v2610, %v2603
          %vm2618 = vcmask 254976
          %v2619 = vsel %vm2618, %v2616, 0.0
          %2620 = vadd.xlane.f32.xlu0 %v2619
          %v2621 = vpop.xlane.xlu0 %2620
          %v2622 = vmul.f32 %v2621, %v795
          %v2624 = vrot.slane %v2622, 1
          %v2627 = vsub.f32 %v2603, %v2622
          %v2628 = vsub.f32 %v2610, %v2624
          %v2629 = vmul.f32 %v2627, %v2627
          %v2630 = vmul.f32 %v2628, %v2628
          %v2633 = vrot.slane %v2630, 7
          %v2634 = vsel %vm2615, %v2633, %v2629
          %v2636 = vsel %vm2618, %v2634, 0.0
          %2637 = vadd.xlane.f32.xlu0 %v2636
          %v2638 = vpop.xlane.xlu0 %2637
          %v2639 = vmul.f32 %v2638, %v795
          %v2640 = vadd.f32 %v2639, 1e-05
          %v2641 = vrsqrt.pop %v2640
          %v2642 = vmul.f32 %v2641, %v2640
          %v2643 = vmul.f32 %v2642, %v2641
          %v2644 = vmul.f32 0.5, %v2643
          %v2645 = vsub.f32 1.5, %v2644
          %v2646 = vmul.f32 %v2641, %v2645
          %vm2647 = vweird.f32 %v2640
          %vm2648 = vweird.f32 %v2641
          %vm2649 = vmor %vm2647, %vm2648
          %v2650 = vsel %vm2649, %v2641, %v2646
          %v2652 = vrot.slane %v2650, 1
          %v2655 = vmul.f32 %v2627, %v2650
          %v2656 = vmul.f32 %v2628, %v2652
          %v2658 = vperm.slane %v2611, 0
          %v2660 = vmul.f32 %v2655, %v2658
          %v2661 = vmul.f32 %v2656, %v2658
          %v2663 = vperm.slane %v2612, 0
          %v2665 = vadd.f32 %v2660, %v2663
          %v2666 = vadd.f32 %v2661, %v2663
          %v2667 = vpack.c.bf16 %v2665, %v2665
          %v2668 = vpack.c.bf16 %v2666, %v2666
          %v2669 = vld [vmem:[%s16] sm:$0xf]
          %v2670 = vld [vmem:[%s16 + $0x4] sm:$0xf]
          %v2671 = vld [vmem:[%s16 + $0x8] sm:$0xf]
          %v2672 = vld [vmem:[%s16 + $0xc] sm:$0xf]
          %v2675 = vunpack.c.l.b16 %v2667
          %v2676 = vunpack.c.l.b16 %v2668
          %v2677 = vrot.slane %v2676, 7
          %v2678 = vsel %vm2615, %v2677, %v2675
          %v2679 = vpack.c.b16 %v2678, %v2678
          %v2684 = vunpack.c.l.b16 %v2669
          %v2685 = vunpack.c.l.b16 %v2670
          %v2686 = vunpack.c.l.b16 %v2671
          %v2687 = vunpack.c.l.b16 %v2672
          %v2688 = vpack.c.b16 %v2685, %v2684
          %v2689 = vpack.c.b16 %v2687, %v2686
          %v2693 = vsel %vm782, %v2679, 0
          %2695 = vmatpush.bf16.msra.mxu0 0
          %2696 = vmatpush.bf16.msra.mxu0 0
          %2697 = vmatpush.bf16.msra.mxu0 0
          %2698 = vmatpush.bf16.msra.mxu0 0
          %2699 = vmatpush.bf16.msra.mxu0 0
          %2700 = vmatpush.bf16.msra.mxu0 0
          %2701 = vmatpush.bf16.msra.mxu0 %v2689
          %2702 = vmatpush.bf16.msra.mxu0 %v2688
          %2703 = vmatmul.bf16.gmra.mxu0 %v2693
          %v2704 = vpop.f32.mrf.mxu0
          %v2705 = vadd.f32 0.0, %v2704
          %v2706 = vpop.f32.mrf.mxu0
          %2707 = vdwg.mxu0
          %v2709 = vrot.slane %v2705, 1
          %vm2711 = vcmask 516096
          %2712 = vst.msk [vmem:[#allocation3] sm:$0x1] %vm2711, %v2705
          %2713 = vst.msk [vmem:[#allocation3 + $0x1] sm:$0x1] %vm2711, %v2709
        $region96: #{tpu_custom_call.1} parent=87 // pred_fallthru
          _
        // Predicated region
        $region97: #{tpu_custom_call.1} parent=87 // pred_check
          %p2714 = pneg %p486
        $region98: #{tpu_custom_call.1} parent=87 // pred_check_branch
          %2716 = sbr.rel (%p2714) target = $region100
        $region99: #{tpu_custom_call.1} parent=87 // pred_region
          %s2717 = smul.u32 2, %s33
          %2719 = vsyncadd [#allocation4], 0
          %s2720 = scalar_lea.hbm %s17, %s2717
          %s2721 = sshll.u32 [#allocation3], 4
          %s2722 = int_to_ptr.vmem [resolvable:$true] %s2721
          %s2723 = sshll.u32 %s2720, 4
          %s2724 = int_to_ptr.hbm [resolvable:$true] %s2723
          %2729 = dma.vmem_to_hbm [thread:$0]  %s2722, 32, %s2724, [#allocation4], 16, 16, 1
        $region100: #{tpu_custom_call.1} parent=87 // pred_fallthru
          _
        // Predicated region
        $region101: #{tpu_custom_call.1} parent=87 // pred_check
          %p2730 = pneg %p486
        $region102: #{tpu_custom_call.1} parent=87 // pred_check_branch
          %2732 = sbr.rel (%p2730) target = $region104
        $region103: #{tpu_custom_call.1} parent=87 // pred_region
          %2734 = dma.done [#allocation4], 32
        $region104: #{tpu_custom_call.1} parent=87 // pred_fallthru
          _
      $region88: #{tpu_custom_call.1} parent=5 // pred_fallthru
        _
      %p2735 = scmp.le.s32.totalorder 2, %s24
      // Predicated region
      $region105: #{tpu_custom_call.1} parent=5 // pred_check
        %p2736 = pneg %p2735
      $region106: #{tpu_custom_call.1} parent=5 // pred_check_branch
        %2738 = sbr.rel (%p2736) target = $region108
      $region107: #{tpu_custom_call.1} parent=5 // pred_region
        %s2739 = ssub.s32 %s24, 2
      $region108: #{tpu_custom_call.1} parent=5 // pred_fallthru
        _
    $region6: #{tpu_custom_call.1} parent=1 // loop_footer
      %s28 = sadd.s32 1, %s24
    $region7: #{tpu_custom_call.1} parent=1 // loop_footer_branch
      %23 = sbr.rel target = $region3
    $region8: #{tpu_custom_call.1} parent=1 // loop_exit
      _
    %2740 = vsyncpa [#allocation4], 1
    %s2741 = scalar_lea.sflag [#allocation4], 1
    %2742 = vsyncpa %s2741, 1

</llo_original>
